<compile_context>
chip_gen: v7x
topology: tpu7x:2x2x1
jax: 0.10.0
libtpu: 0.0.40
codegen_flags: <defaults>
</compile_context>

<pallas_src>
import functools

import jax
import jax.numpy as jnp
from jax.experimental import pallas as pl
from jax.experimental.pallas import tpu as pltpu

CHANNELS = [32, 64, 128, 256]
RATIOS = [2, 2, 8, 8]
DILATIONS = (1, 3, 9, 27)
_HALO = sum(DILATIONS)                 # 40 halo rows per side for the res stack
_L_OFF = (1, 4, 13, 40)                # cumulative dilation margins per block
_VMEM_LIMIT = 32 * 1024 * 1024


# ----------------------------------------------------------------------------
# Shared helpers (Pallas path and pure-JAX reference)
# ----------------------------------------------------------------------------
_SQRT_2_OVER_PI = 0.7978845608028654


def _gelu(x):
    # tanh-approximate GELU (see TODO above).
    return 0.5 * x * (1.0 + jnp.tanh(_SQRT_2_OVER_PI * (x + 0.044715 * x * x * x)))


def pad_wave(x, period=256):
    L = x.shape[1]
    if L % period != 0:
        x = jnp.pad(x, ((0, 0), (0, period - L % period)))
    return x


def _reflect_pad_time(x, pad):
    """Reflect-pad (B, T, C) along time, matching torch 'reflect'."""
    if pad == 0:
        return x
    left = x[:, 1:pad + 1, :][:, ::-1, :]
    right = x[:, -1 - pad:-1, :][:, ::-1, :]
    return jnp.concatenate([left, x, right], axis=1)


def _pick_tile(n):
    # TODO(synk): pad to a multiple of 8 + masked tail for awkward long shapes.
    for t in (256, 512, 128, 64, 32, 16, 8):
        if n % t == 0:
            return t
    return n


def _check(name, got, want, tol):
    err = float(jnp.max(jnp.abs(got - want)))
    assert jnp.allclose(got, want, atol=tol, rtol=tol), (
        f"{name}: Pallas vs reference mismatch (max abs err {err:.3e})")


# ----------------------------------------------------------------------------
# pipeline_mode=pl.Buffered(1) for grid-invariant inputs (probed once).
# ----------------------------------------------------------------------------
_PIPELINE_MODE = []        # lazily populated: [None] or [pl.Buffered(1)]


def _invariant_pipeline_mode():
    if not _PIPELINE_MODE:
        mode = None
        try:
            buf1 = pl.Buffered(1)
            inv = pl.BlockSpec((8, 128), lambda i: (0, 0), pipeline_mode=buf1)

            def _probe(a_ref, b_ref, o_ref):
                o_ref[...] = a_ref[...] + b_ref[...]

            a = jnp.arange(16 * 128, dtype=jnp.float32).reshape(16, 128)
            b = jnp.ones((8, 128), jnp.float32)
            out = pl.pallas_call(
                _probe,
                out_shape=jax.ShapeDtypeStruct((16, 128), jnp.float32),
                grid=(2,),
                in_specs=[pl.BlockSpec((8, 128), lambda i: (i, 0)), inv],
                out_specs=pl.BlockSpec((8, 128), lambda i: (i, 0)),
            )(a, b)
            if bool(jnp.allclose(jax.block_until_ready(out), a + 1.0)):
                mode = buf1
        except Exception:
            mode = None
        _PIPELINE_MODE.append(mode)
    return _PIPELINE_MODE[0]


def _inv_spec(shape):
    """Grid-invariant input: full-array block, single-buffered if supported."""
    nd = len(shape)
    index_map = lambda *_: (0,) * nd
    mode = _invariant_pipeline_mode()
    if mode is None:
        return pl.BlockSpec(shape, index_map)
    return pl.BlockSpec(shape, index_map, pipeline_mode=mode)


# ----------------------------------------------------------------------------
# Kernel 1: fused, time-tiled ContentEncoderResStack (4 gated blocks + GELU)
# ----------------------------------------------------------------------------
def _rev_mat(d, dtype):
    """(d, d) antidiagonal permutation matrix built from iota (no constants)."""
    r = jax.lax.broadcasted_iota(jnp.int32, (d, d), 0)
    c = jax.lax.broadcasted_iota(jnp.int32, (d, d), 1)
    return (r + c == d - 1).astype(dtype)


def _resstack_kernel(TT, C, NT, x_ref, halo_ref, wg_ref, bg_ref, wr_ref,
                     br_ref, wo_ref, bo_ref, o_ref, buf):
    f32 = jnp.float32
    # Load the tile + its two 40-row halos into the persistent scratch.  buf is
    # the canonical home of x for all 4 blocks.
    h = halo_ref[0]                                     # (80, C)
    buf[0:_HALO, :] = h[0:_HALO, :]
    buf[_HALO:_HALO + TT, :] = x_ref[0]
    buf[_HALO + TT:_HALO + TT + _HALO, :] = h[_HALO:2 * _HALO, :]

    if NT > 1:
        t = pl.program_id(0) % NT

    for blk, d in enumerate(DILATIONS):
        lo = _L_OFF[blk]
        hi = TT + 2 * _HALO - lo

        # Reflect-padding fix-ups: only on global-edge tiles, overwrite the
        # rows of this block's input that fall outside the real signal with
        # reflections of in-tile rows (reversal = one tiny antidiagonal matmul
        # + one block store instead of d masked single-row stores).
        def _fix_left(d=d):
            if d == 1:
                buf[_HALO - 1:_HALO, :] = buf[_HALO + 1:_HALO + 2, :]
            else:
                src = buf[_HALO + 1:_HALO + 1 + d, :]
                rev = jnp.dot(_rev_mat(d, src.dtype), src,
                              preferred_element_type=f32)
                buf[_HALO - d:_HALO, :] = rev.astype(buf.dtype)

        def _fix_right(d=d):
            if d == 1:
                buf[_HALO + TT:_HALO + TT + 1, :] = \
                    buf[_HALO + TT - 2:_HALO + TT - 1, :]
            else:
                src = buf[_HALO + TT - 1 - d:_HALO + TT - 1, :]
                rev = jnp.dot(_rev_mat(d, src.dtype), src,
                              preferred_element_type=f32)
                buf[_HALO + TT:_HALO + TT + d, :] = rev.astype(buf.dtype)

        if NT == 1:
            _fix_left()
            _fix_right()
        else:
            pl.when(t == 0)(_fix_left)
            pl.when(t == NT - 1)(_fix_right)

        # Gated dilated conv: 3 accumulating MXU dots (taps -d, 0, +d), the 1x1
        # res conv as a 4th dot; all accumulation in f32.
        x_m = buf[lo - d:hi - d, :]
        x_c = buf[lo:hi, :]
        x_p = buf[lo + d:hi + d, :]
        z = (jnp.dot(x_m, wg_ref[3 * blk + 0], preferred_element_type=f32)
             + jnp.dot(x_c, wg_ref[3 * blk + 1], preferred_element_type=f32)
             + jnp.dot(x_p, wg_ref[3 * blk + 2], preferred_element_type=f32)
             + bg_ref[blk])
        res = (jnp.dot(x_c, wr_ref[blk], preferred_element_type=f32)
               + br_ref[blk])
        gated = jax.nn.sigmoid(z[:, C:]) * jnp.tanh(z[:, :C])
        y = (jnp.dot(gated.astype(buf.dtype), wo_ref[blk],
                     preferred_element_type=f32) + bo_ref[blk] + res)
        buf[lo:hi, :] = y.astype(buf.dtype)

    # Stack epilogue: the GELU that follows the stack, fused.
    o_ref[0] = _gelu(buf[_HALO:_HALO + TT, :].astype(f32)).astype(o_ref.dtype)


def resstack_pallas(x, stack_params):
    """Fused ContentEncoderResStack (+ trailing GELU), tiled along time.

    x: (B, T, C) channels-last bf16.
    """
    B, T, C = x.shape
    wg, bg, wr, br, wo, bo = stack_params
    TT = _pick_tile(T)
    if TT < 2 * _HALO:          # too short to tile: halo slicing needs TT >= 40
        TT = T
    NT = T // TT
    xr = x.reshape(B, NT, TT, C)
    if NT == 1:
        halo = jnp.zeros((B, 1, 2 * _HALO, C), x.dtype)  # fixed up in-kernel
    else:
        left = jnp.concatenate(
            [xr[:, :1, TT - _HALO:], xr[:, :-1, TT - _HALO:]], axis=1)
        right = jnp.concatenate(
            [xr[:, 1:, :_HALO], xr[:, -1:, :_HALO]], axis=1)
        halo = jnp.concatenate([left, right], axis=2)     # (B, NT, 80, C)

    kern = functools.partial(_resstack_kernel, TT, C, NT)
    out = pl.pallas_call(
        kern,
        out_shape=jax.ShapeDtypeStruct((B * NT, TT, C), x.dtype),
        grid_spec=pltpu.PrefetchScalarGridSpec(
            num_scalar_prefetch=0,
            grid=(B * NT,),
            in_specs=[
                pl.BlockSpec((1, TT, C), lambda i: (i, 0, 0)),
                pl.BlockSpec((1, 2 * _HALO, C), lambda i: (i, 0, 0)),
                _inv_spec((12, C, 2 * C)),
                _inv_spec((4, 1, 2 * C)),
                _inv_spec((4, C, C)),
                _inv_spec((4, 1, C)),
                _inv_spec((4, C, C)),
                _inv_spec((4, 1, C)),
            ],
            out_specs=pl.BlockSpec((1, TT, C), lambda i: (i, 0, 0)),
            scratch_shapes=[pltpu.VMEM((TT + 2 * _HALO, C), x.dtype)],
        ),
        compiler_params=pltpu.CompilerParams(
            dimension_semantics=("parallel",),
            vmem_limit_bytes=_VMEM_LIMIT),
    )(xr.reshape(B * NT, TT, C), halo.reshape(B * NT, 2 * _HALO, C),
      wg, bg, wr, br, wo, bo)
    return out.reshape(B, T, C)


# ----------------------------------------------------------------------------
# Kernel 2: Conv1d (reflect pad) as k/stride accumulating matmuls per tile,
#           with optional GELU / final-normalisation epilogues.
# ----------------------------------------------------------------------------
def _conv_kernel(kp, cin_g, apply_gelu, normalize, x_ref, w_ref, b_ref, o_ref):
    TT = o_ref.shape[1]
    xw = x_ref[0]                                        # (W, cin_g) bf16
    y = b_ref[...].astype(jnp.float32)                   # (1, Cout), broadcasts
    for j in range(kp):
        xs = xw[j:j + TT, :]
        if cin_g == 1:        # input layer (K=1): broadcast multiply, no MXU
            y = y + xs.astype(jnp.float32) * w_ref[j].astype(jnp.float32)
        else:
            y = y + jnp.dot(xs, w_ref[j], preferred_element_type=jnp.float32)
    if apply_gelu:
        y = _gelu(y)
    if normalize:   # x / sqrt(sum_c(x^2 + 1e-6)) -- matches the torch module
        y = y * jax.lax.rsqrt(jnp.sum(y * y + 1e-6, axis=-1, keepdims=True))
    o_ref[0] = y.astype(o_ref.dtype)


def conv1d_pallas(x, w_pk, b2d, *, stride, pad, apply_gelu=False,
                  normalize=False, out_dtype=None):
    """Conv1d(reflect pad) on channels-last x.

    x: (B, T, Cin) bf16, w_pk: (k/stride, stride*Cin, Cout) bf16, b2d: (1, Cout).
    """
    B, T, Cin = x.shape
    kp, cin_g, Cout = w_pk.shape
    assert cin_g == stride * Cin
    out_dtype = out_dtype or x.dtype
    xp = _reflect_pad_time(x, pad)
    Tp = T + 2 * pad
    assert Tp % stride == 0
    xg = xp.reshape(B, Tp // stride, cin_g)              # stride groups (free)
    T_out = Tp // stride - kp + 1
    TT = _pick_tile(T_out)
    NT = T_out // TT
    W = TT + kp - 1
    if NT == 1:
        x_win = xg.reshape(B, 1, W, cin_g)
    else:
        main = xg[:, :NT * TT].reshape(B, NT, TT, cin_g)
        halo_src = xg[:, TT:, :]
        halo_src = jnp.pad(
            halo_src, ((0, 0), (0, NT * TT - halo_src.shape[1]), (0, 0)))
        halo = halo_src.reshape(B, NT, TT, cin_g)[:, :, :kp - 1, :]
        x_win = jnp.concatenate([main, halo], axis=2)
    x_win = x_win.reshape(B * NT, W, cin_g)

    kern = functools.partial(_conv_kernel, kp, cin_g, apply_gelu, normalize)
    out = pl.pallas_call(
        kern,
        out_shape=jax.ShapeDtypeStruct((B * NT, TT, Cout), out_dtype),
        grid_spec=pltpu.PrefetchScalarGridSpec(
            num_scalar_prefetch=0,
            grid=(B * NT,),
            in_specs=[
                pl.BlockSpec((1, W, cin_g), lambda i: (i, 0, 0)),
                _inv_spec((kp, cin_g, Cout)),
                _inv_spec((1, Cout)),
            ],
            out_specs=pl.BlockSpec((1, TT, Cout), lambda i: (i, 0, 0)),
        ),
        compiler_params=pltpu.CompilerParams(
            dimension_semantics=("parallel",),
            vmem_limit_bytes=_VMEM_LIMIT),
    )(x_win, w_pk, b2d)
    return out.reshape(B, T_out, Cout)


# ----------------------------------------------------------------------------
# Parameter construction (torch layouts) and packing into kernel layouts.
# ----------------------------------------------------------------------------
def _wn_conv_weight(key, out_ch, in_ch, ksize):
    """weight_norm: w = g * v / ||v||  (per output channel, torch dim=0)."""
    kv, kg = jax.random.split(key)
    v = jax.random.normal(kv, (out_ch, in_ch, ksize), jnp.float32)
    g = 1.0 + 0.1 * jax.random.normal(kg, (out_ch,), jnp.float32)
    norm = jnp.sqrt(jnp.sum(v * v, axis=(1, 2), keepdims=True) + 1e-12)
    return g[:, None, None] * v / norm


def _conv_params(key, out_ch, in_ch, ksize, bias=True):
    kw, kb = jax.random.split(key)
    w = _wn_conv_weight(kw, out_ch, in_ch, ksize)
    b = 0.02 * jax.random.normal(kb, (out_ch,), jnp.float32) if bias else None
    return w, b


def make_raw_params(key):
    keys = jax.random.split(key, 5)
    raw = {"input": _conv_params(keys[0], 32, 1, 7)}
    stacks = []
    for C, sk in zip(CHANNELS, jax.random.split(keys[1], 4)):
        blocks = []
        for bk in jax.random.split(sk, 4):
            k1, k2, k3 = jax.random.split(bk, 3)
            w_res, b_res = _conv_params(k1, C, C, 1)
            w_in, b_in = _conv_params(k2, 2 * C, C, 3)
            w_out, b_out = _conv_params(k3, C, C, 1)
            blocks.append((w_res, b_res, w_in, b_in, w_out, b_out))
        stacks.append(blocks)
    raw["stacks"] = stacks
    downs = []
    for c1, c2, r, dk in zip(CHANNELS, CHANNELS[1:] + [512], RATIOS,
                             jax.random.split(keys[2], 4)):
        downs.append(_conv_params(dk, c2, c1, 2 * r))
    raw["downs"] = downs
    raw["out1"] = _conv_params(keys[3], 512, 512, 7)
    raw["out2"] = _conv_params(keys[4], 4, 512, 7, bias=False)
    return raw


def _pack_conv(w, b, stride):
    """(Cout, Cin, k) torch weight -> (k/stride, stride*Cin, Cout) bf16."""
    Cout, Cin, k = w.shape
    assert k % stride == 0
    kp = k // stride
    w_pk = (jnp.transpose(w, (2, 1, 0))
            .reshape(kp, stride * Cin, Cout).astype(jnp.bfloat16))
    b2d = (jnp.zeros((1, Cout), jnp.float32) if b is None
           else b.reshape(1, Cout).astype(jnp.float32))
    return w_pk, b2d


def _pack_stack(blocks):
    """Pack 4 res blocks into per-tap gate weights + res/out 1x1 weights."""
    C = blocks[0][0].shape[0]
    wg_l, bg_l, wr_l, br_l, wo_l, bo_l = [], [], [], [], [], []
    for (w_res, b_res, w_in, b_in, w_out, b_out) in blocks:
        wg_l.append(jnp.transpose(w_in, (2, 1, 0)).astype(jnp.bfloat16))
        bg_l.append(b_in.reshape(1, 2 * C).astype(jnp.float32))
        wr_l.append(jnp.transpose(w_res[:, :, 0]).astype(jnp.bfloat16))
        br_l.append(b_res.reshape(1, C).astype(jnp.float32))
        wo_l.append(jnp.transpose(w_out[:, :, 0]).astype(jnp.bfloat16))
        bo_l.append(b_out.reshape(1, C).astype(jnp.float32))
    return (jnp.concatenate(wg_l, axis=0),                 # (12, C, 2C)
            jnp.stack(bg_l), jnp.stack(wr_l), jnp.stack(br_l),
            jnp.stack(wo_l), jnp.stack(bo_l))


def _q(w):
    return w.astype(jnp.bfloat16).astype(jnp.float32)


def quantize_raw(raw):
    """bf16-rounded copies of the weights (biases stay f32) for the reference."""
    qr = {"input": (_q(raw["input"][0]), raw["input"][1])}
    qr["stacks"] = [[(_q(wr), br, _q(wi), bi, _q(wo), bo)
                     for (wr, br, wi, bi, wo, bo) in blocks]
                    for blocks in raw["stacks"]]
    qr["downs"] = [(_q(w), b) for (w, b) in raw["downs"]]
    qr["out1"] = (_q(raw["out1"][0]), raw["out1"][1])
    qr["out2"] = (_q(raw["out2"][0]), raw["out2"][1])
    return qr


# ----------------------------------------------------------------------------
# Full ContentEncoder forward (Pallas path)
# ----------------------------------------------------------------------------
def content_encoder_pallas(wave, raw):
    """wave: (B, L) f32.  Returns (B, 4, L_padded/256) like the torch module."""
    x = pad_wave(wave).astype(jnp.bfloat16)[:, :, None]   # (B, L, 1)
    in_w, in_b = _pack_conv(*raw["input"], stride=1)
    x = conv1d_pallas(x, in_w, in_b, stride=1, pad=3)
    for i, r in enumerate(RATIOS):
        sp = _pack_stack(raw["stacks"][i])
        x = resstack_pallas(x, sp)                         # 4 blocks + GELU
        dw, db = _pack_conv(*raw["downs"][i], stride=r)
        x = conv1d_pallas(x, dw, db, stride=r, pad=r // 2,
                          apply_gelu=(i == 3))             # GELU = output_layers[0]
    ow1, ob1 = _pack_conv(*raw["out1"], stride=1)
    x = conv1d_pallas(x, ow1, ob1, stride=1, pad=3, apply_gelu=True)
    ow2, ob2 = _pack_conv(*raw["out2"], stride=1)
    x = conv1d_pallas(x, ow2, ob2, stride=1, pad=3, normalize=True,
                      out_dtype=jnp.float32)
    return jnp.transpose(x, (0, 2, 1))                     # (B, 4, T)


# ----------------------------------------------------------------------------
# Pure-JAX reference (f32 math, bf16-rounded weights)
# ----------------------------------------------------------------------------
def _conv_ref(x, w, b, stride, pad):
    B, T, Cin = x.shape
    Cout, _, k = w.shape
    hp = jax.lax.Precision.HIGHEST
    xp = _reflect_pad_time(x, pad)
    T_out = (T + 2 * pad - k) // stride + 1
    out = jnp.zeros((B, T_out, Cout), jnp.float32)
    if b is not None:
        out = out + b
    for j in range(k):
        xs = xp[:, j:j + stride * (T_out - 1) + 1:stride, :]
        out = out + jnp.einsum("btc,nc->btn", xs, w[:, :, j], precision=hp)
    return out


def _resblock_ref(x, blk_params, d):
    w_res, b_res, w_in, b_in, w_out, b_out = blk_params
    T, C = x.shape[1], x.shape[2]
    hp = jax.lax.Precision.HIGHEST
    res = jnp.einsum("btc,nc->btn", x, w_res[:, :, 0], precision=hp) + b_res
    xp = _reflect_pad_time(x, d)
    z = b_in
    for k in range(3):
        z = z + jnp.einsum("btc,nc->btn", xp[:, k * d:k * d + T, :],
                           w_in[:, :, k], precision=hp)
    gated = jax.nn.sigmoid(z[..., C:]) * jnp.tanh(z[..., :C])
    return (jnp.einsum("btc,nc->btn", gated, w_out[:, :, 0], precision=hp)
            + b_out + res)


def content_encoder_ref(wave, raw):
    rq = quantize_raw(raw)
    x = pad_wave(wave).astype(jnp.bfloat16).astype(jnp.float32)[:, :, None]
    x = _conv_ref(x, *rq["input"], stride=1, pad=3)
    for i, r in enumerate(RATIOS):
        for blk in range(4):
            x = _resblock_ref(x, rq["stacks"][i][blk], DILATIONS[blk])
        x = _gelu(x)
        x = _conv_ref(x, *rq["downs"][i], stride=r, pad=r // 2)
    x = _gelu(x)
    x = _conv_ref(x, *rq["out1"], stride=1, pad=3)
    x = _gelu(x)
    x = _conv_ref(x, *rq["out2"], stride=1, pad=3)
    x = x * jax.lax.rsqrt(jnp.sum(x * x + 1e-6, axis=-1, keepdims=True))
    return jnp.transpose(x, (0, 2, 1))


# ----------------------------------------------------------------------------
if __name__ == "__main__":
    # Smallest shapes consistent with the module: pad period 256, total
    # downsampling 256, deepest dilation 27 < L/32, k=7 output convs need
    # T_out >= 4  =>  L = 1024.
    B, L = 2, 1024
    key = jax.random.PRNGKey(0)
    kx, kparam = jax.random.split(key)
    wave = jax.random.normal(kx, (B, L), jnp.float32)
    raw = make_raw_params(kparam)
    raw_q = quantize_raw(raw)

    # --- unit checks on the trickiest kernels (tight tolerances) ------------
    x_in_bf16 = pad_wave(wave).astype(jnp.bfloat16)[:, :, None]
    x_in_f32 = x_in_bf16.astype(jnp.float32)

    c0_ref = _conv_ref(x_in_f32, *raw_q["input"], stride=1, pad=3)
    iw, ib = _pack_conv(*raw["input"], stride=1)
    c0_pl = conv1d_pallas(x_in_bf16, iw, ib, stride=1, pad=3)
    _check("input conv", c0_pl.astype(jnp.float32), c0_ref, 5e-3)

    s0_in = c0_ref.astype(jnp.bfloat16)
    s0_ref = s0_in.astype(jnp.float32)
    for blk in range(4):
        s0_ref = _resblock_ref(s0_ref, raw_q["stacks"][0][blk], DILATIONS[blk])
    s0_ref = _gelu(s0_ref)
    s0_pl = resstack_pallas(s0_in, _pack_stack(raw["stacks"][0]))
    _check("res stack 0 (tiled, halo)", s0_pl.astype(jnp.float32), s0_ref, 5e-2)

    d0_ref = _conv_ref(s0_ref, *raw_q["downs"][0], stride=2, pad=1)
    dw, db = _pack_conv(*raw["downs"][0], stride=2)
    d0_pl = conv1d_pallas(s0_ref.astype(jnp.bfloat16), dw, db, stride=2, pad=1)
    _check("downsample conv 0", d0_pl.astype(jnp.float32), d0_ref, 3e-2)

    # --- full forward --------------------------------------------------------
    enc = jax.jit(content_encoder_pallas)
    out = jax.block_until_ready(enc(wave, raw))
    assert out.shape == (B, 4, L // 256), out.shape
    ref = content_encoder_ref(wave, raw)
    _check("full encoder", out, ref, 8e-2)

    print("KERNEL_OK")
</pallas_src>

<mosaic_0001>
module attributes {stable_mosaic.version = 11 : i64} {
  func.func @_probe(%arg0: i32, %arg1: memref<8x128xf32, #tpu.memory_space<vmem>>, %arg2: memref<8x128xf32, #tpu.memory_space<vmem>>, %arg3: memref<8x128xf32, #tpu.memory_space<vmem>>) attributes {dimension_semantics = [#tpu.dimension_semantics<arbitrary>], iteration_bounds = array<i64: 2>, scalar_prefetch = 0 : i64, scratch_operands = 0 : i64, tpu.core_type = #tpu.core_type<tc>, window_params = [{transform_indices = @transform_0, window_bounds = array<i64: 8, 128>}, {pipeline_mode = #tpu.pipeline_mode<synchronous>, transform_indices = @transform_1, window_bounds = array<i64: 8, 128>}, {transform_indices = @transform_2, window_bounds = array<i64: 8, 128>}]} {
    %c0 = arith.constant 0 : index
    %c0_0 = arith.constant 0 : index
    %0 = vector.load %arg1[%c0, %c0_0] : memref<8x128xf32, #tpu.memory_space<vmem>>, vector<8x128xf32>
    %c0_1 = arith.constant 0 : index
    %c0_2 = arith.constant 0 : index
    %1 = vector.load %arg2[%c0_1, %c0_2] : memref<8x128xf32, #tpu.memory_space<vmem>>, vector<8x128xf32>
    %2 = arith.addf %0, %1 : vector<8x128xf32>
    %c0_3 = arith.constant 0 : index
    %c0_4 = arith.constant 0 : index
    %3 = vector.load %arg3[%c0_3, %c0_4] : memref<8x128xf32, #tpu.memory_space<vmem>>, vector<8x128xf32>
    tpu.vector_store %arg3[%c0_3, %c0_4], %2 {strides = array<i32>} : memref<8x128xf32, #tpu.memory_space<vmem>>, vector<8x128xf32>,
    return
  }
  func.func @transform_0(%arg0: i32) -> (i32, i32) {
    %c0_i32 = arith.constant 0 : i32
    %c0_i32_0 = arith.constant 0 : i32
    return %arg0, %c0_i32 : i32, i32
  }
  func.func @transform_1(%arg0: i32) -> (i32, i32) {
    %c0_i32 = arith.constant 0 : i32
    %c0_i32_0 = arith.constant 0 : i32
    %c0_i32_1 = arith.constant 0 : i32
    return %c0_i32, %c0_i32_0 : i32, i32
  }
  func.func @transform_2(%arg0: i32) -> (i32, i32) {
    %c0_i32 = arith.constant 0 : i32
    %c0_i32_0 = arith.constant 0 : i32
    return %arg0, %c0_i32 : i32, i32
  }
}

module attributes {stable_mosaic.version = 11 : i64} {
  func.func @_conv_kernel(%arg0: i32, %arg1: memref<1x262x1xbf16, #tpu.memory_space<vmem>>, %arg2: memref<7x1x32xbf16, #tpu.memory_space<vmem>>, %arg3: memref<1x32xf32, #tpu.memory_space<vmem>>, %arg4: memref<1x256x32xbf16, #tpu.memory_space<vmem>>) attributes {dimension_semantics = [#tpu.dimension_semantics<parallel>], iteration_bounds = array<i64: 8>, scalar_prefetch = 0 : i64, scratch_operands = 0 : i64, tpu.core_type = #tpu.core_type<tc>, window_params = [{transform_indices = @transform_0, window_bounds = array<i64: 1, 262, 1>}, {pipeline_mode = #tpu.pipeline_mode<synchronous>, transform_indices = @transform_1, window_bounds = array<i64: 7, 1, 32>}, {pipeline_mode = #tpu.pipeline_mode<synchronous>, transform_indices = @transform_2, window_bounds = array<i64: 1, 32>}, {transform_indices = @transform_3, window_bounds = array<i64: 1, 256, 32>}]} {
    %c0 = arith.constant 0 : index
    %c0_0 = arith.constant 0 : index
    %c0_1 = arith.constant 0 : index
    %0 = vector.load %arg1[%c0, %c0_0, %c0_1] : memref<1x262x1xbf16, #tpu.memory_space<vmem>>, vector<1x262x1xbf16>
    %1 = vector.shape_cast %0 : vector<1x262x1xbf16> to vector<262x1xbf16>
    %c0_2 = arith.constant 0 : index
    %c0_3 = arith.constant 0 : index
    %2 = vector.load %arg3[%c0_2, %c0_3] : memref<1x32xf32, #tpu.memory_space<vmem>>, vector<1x32xf32>
    %3 = vector.extract_strided_slice %1 {offsets = [0, 0], sizes = [256, 1], strides = [1, 1]} : vector<262x1xbf16> to vector<256x1xbf16>
    %4 = arith.extf %3 : vector<256x1xbf16> to vector<256x1xf32>
    %c0_4 = arith.constant 0 : index
    %c0_5 = arith.constant 0 : index
    %c0_6 = arith.constant 0 : index
    %5 = vector.load %arg2[%c0_4, %c0_5, %c0_6] : memref<7x1x32xbf16, #tpu.memory_space<vmem>>, vector<1x1x32xbf16>
    %6 = vector.shape_cast %5 : vector<1x1x32xbf16> to vector<1x32xbf16>
    %7 = arith.extf %6 : vector<1x32xbf16> to vector<1x32xf32>
    %8 = vector.broadcast %4 : vector<256x1xf32> to vector<256x32xf32>
    %9 = vector.broadcast %7 : vector<1x32xf32> to vector<256x32xf32>
    %10 = arith.mulf %8, %9 : vector<256x32xf32>
    %11 = vector.broadcast %2 : vector<1x32xf32> to vector<256x32xf32>
    %12 = arith.addf %11, %10 : vector<256x32xf32>
    %13 = vector.extract_strided_slice %1 {offsets = [1, 0], sizes = [256, 1], strides = [1, 1]} : vector<262x1xbf16> to vector<256x1xbf16>
    %14 = arith.extf %13 : vector<256x1xbf16> to vector<256x1xf32>
    %c1 = arith.constant 1 : index
    %c0_7 = arith.constant 0 : index
    %c0_8 = arith.constant 0 : index
    %15 = vector.load %arg2[%c1, %c0_7, %c0_8] : memref<7x1x32xbf16, #tpu.memory_space<vmem>>, vector<1x1x32xbf16>
    %16 = vector.shape_cast %15 : vector<1x1x32xbf16> to vector<1x32xbf16>
    %17 = arith.extf %16 : vector<1x32xbf16> to vector<1x32xf32>
    %18 = vector.broadcast %14 : vector<256x1xf32> to vector<256x32xf32>
    %19 = vector.broadcast %17 : vector<1x32xf32> to vector<256x32xf32>
    %20 = arith.mulf %18, %19 : vector<256x32xf32>
    %21 = arith.addf %12, %20 : vector<256x32xf32>
    %22 = vector.extract_strided_slice %1 {offsets = [2, 0], sizes = [256, 1], strides = [1, 1]} : vector<262x1xbf16> to vector<256x1xbf16>
    %23 = arith.extf %22 : vector<256x1xbf16> to vector<256x1xf32>
    %c2 = arith.constant 2 : index
    %c0_9 = arith.constant 0 : index
    %c0_10 = arith.constant 0 : index
    %24 = vector.load %arg2[%c2, %c0_9, %c0_10] : memref<7x1x32xbf16, #tpu.memory_space<vmem>>, vector<1x1x32xbf16>
    %25 = vector.shape_cast %24 : vector<1x1x32xbf16> to vector<1x32xbf16>
    %26 = arith.extf %25 : vector<1x32xbf16> to vector<1x32xf32>
    %27 = vector.broadcast %23 : vector<256x1xf32> to vector<256x32xf32>
    %28 = vector.broadcast %26 : vector<1x32xf32> to vector<256x32xf32>
    %29 = arith.mulf %27, %28 : vector<256x32xf32>
    %30 = arith.addf %21, %29 : vector<256x32xf32>
    %31 = vector.extract_strided_slice %1 {offsets = [3, 0], sizes = [256, 1], strides = [1, 1]} : vector<262x1xbf16> to vector<256x1xbf16>
    %32 = arith.extf %31 : vector<256x1xbf16> to vector<256x1xf32>
    %c3 = arith.constant 3 : index
    %c0_11 = arith.constant 0 : index
    %c0_12 = arith.constant 0 : index
    %33 = vector.load %arg2[%c3, %c0_11, %c0_12] : memref<7x1x32xbf16, #tpu.memory_space<vmem>>, vector<1x1x32xbf16>
    %34 = vector.shape_cast %33 : vector<1x1x32xbf16> to vector<1x32xbf16>
    %35 = arith.extf %34 : vector<1x32xbf16> to vector<1x32xf32>
    %36 = vector.broadcast %32 : vector<256x1xf32> to vector<256x32xf32>
    %37 = vector.broadcast %35 : vector<1x32xf32> to vector<256x32xf32>
    %38 = arith.mulf %36, %37 : vector<256x32xf32>
    %39 = arith.addf %30, %38 : vector<256x32xf32>
    %40 = vector.extract_strided_slice %1 {offsets = [4, 0], sizes = [256, 1], strides = [1, 1]} : vector<262x1xbf16> to vector<256x1xbf16>
    %41 = arith.extf %40 : vector<256x1xbf16> to vector<256x1xf32>
    %c4 = arith.constant 4 : index
    %c0_13 = arith.constant 0 : index
    %c0_14 = arith.constant 0 : index
    %42 = vector.load %arg2[%c4, %c0_13, %c0_14] : memref<7x1x32xbf16, #tpu.memory_space<vmem>>, vector<1x1x32xbf16>
    %43 = vector.shape_cast %42 : vector<1x1x32xbf16> to vector<1x32xbf16>
    %44 = arith.extf %43 : vector<1x32xbf16> to vector<1x32xf32>
    %45 = vector.broadcast %41 : vector<256x1xf32> to vector<256x32xf32>
    %46 = vector.broadcast %44 : vector<1x32xf32> to vector<256x32xf32>
    %47 = arith.mulf %45, %46 : vector<256x32xf32>
    %48 = arith.addf %39, %47 : vector<256x32xf32>
    %49 = vector.extract_strided_slice %1 {offsets = [5, 0], sizes = [256, 1], strides = [1, 1]} : vector<262x1xbf16> to vector<256x1xbf16>
    %50 = arith.extf %49 : vector<256x1xbf16> to vector<256x1xf32>
    %c5 = arith.constant 5 : index
    %c0_15 = arith.constant 0 : index
    %c0_16 = arith.constant 0 : index
    %51 = vector.load %arg2[%c5, %c0_15, %c0_16] : memref<7x1x32xbf16, #tpu.memory_space<vmem>>, vector<1x1x32xbf16>
    %52 = vector.shape_cast %51 : vector<1x1x32xbf16> to vector<1x32xbf16>
    %53 = arith.extf %52 : vector<1x32xbf16> to vector<1x32xf32>
    %54 = vector.broadcast %50 : vector<256x1xf32> to vector<256x32xf32>
    %55 = vector.broadcast %53 : vector<1x32xf32> to vector<256x32xf32>
    %56 = arith.mulf %54, %55 : vector<256x32xf32>
    %57 = arith.addf %48, %56 : vector<256x32xf32>
    %58 = vector.extract_strided_slice %1 {offsets = [6, 0], sizes = [256, 1], strides = [1, 1]} : vector<262x1xbf16> to vector<256x1xbf16>
    %59 = arith.extf %58 : vector<256x1xbf16> to vector<256x1xf32>
    %c6 = arith.constant 6 : index
    %c0_17 = arith.constant 0 : index
    %c0_18 = arith.constant 0 : index
    %60 = vector.load %arg2[%c6, %c0_17, %c0_18] : memref<7x1x32xbf16, #tpu.memory_space<vmem>>, vector<1x1x32xbf16>
    %61 = vector.shape_cast %60 : vector<1x1x32xbf16> to vector<1x32xbf16>
    %62 = arith.extf %61 : vector<1x32xbf16> to vector<1x32xf32>
    %63 = vector.broadcast %59 : vector<256x1xf32> to vector<256x32xf32>
    %64 = vector.broadcast %62 : vector<1x32xf32> to vector<256x32xf32>
    %65 = arith.mulf %63, %64 : vector<256x32xf32>
    %66 = arith.addf %57, %65 : vector<256x32xf32>
    %67 = arith.truncf %66 : vector<256x32xf32> to vector<256x32xbf16>
    %c0_19 = arith.constant 0 : index
    %c0_20 = arith.constant 0 : index
    %c0_21 = arith.constant 0 : index
    %68 = vector.load %arg4[%c0_19, %c0_20, %c0_21] : memref<1x256x32xbf16, #tpu.memory_space<vmem>>, vector<1x256x32xbf16>
    %69 = vector.shape_cast %68 : vector<1x256x32xbf16> to vector<256x32xbf16>
    %70 = vector.shape_cast %67 : vector<256x32xbf16> to vector<1x256x32xbf16>
    tpu.vector_store %arg4[%c0_19, %c0_20, %c0_21], %70 {strides = array<i32>} : memref<1x256x32xbf16, #tpu.memory_space<vmem>>, vector<1x256x32xbf16>,
    return
  }
  func.func @transform_0(%arg0: i32) -> (i32, i32, i32) {
    %c0_i32 = arith.constant 0 : i32
    %c0_i32_0 = arith.constant 0 : i32
    %c0_i32_1 = arith.constant 0 : i32
    return %arg0, %c0_i32, %c0_i32_0 : i32, i32, i32
  }
  func.func @transform_1(%arg0: i32) -> (i32, i32, i32) {
    %c0_i32 = arith.constant 0 : i32
    %c0_i32_0 = arith.constant 0 : i32
    %c0_i32_1 = arith.constant 0 : i32
    %c0_i32_2 = arith.constant 0 : i32
    return %c0_i32, %c0_i32_0, %c0_i32_1 : i32, i32, i32
  }
  func.func @transform_2(%arg0: i32) -> (i32, i32) {
    %c0_i32 = arith.constant 0 : i32
    %c0_i32_0 = arith.constant 0 : i32
    %c0_i32_1 = arith.constant 0 : i32
    return %c0_i32, %c0_i32_0 : i32, i32
  }
  func.func @transform_3(%arg0: i32) -> (i32, i32, i32) {
    %c0_i32 = arith.constant 0 : i32
    %c0_i32_0 = arith.constant 0 : i32
    %c0_i32_1 = arith.constant 0 : i32
    return %arg0, %c0_i32, %c0_i32_0 : i32, i32, i32
  }
}

</mosaic_0001>

<llo_original>
// kernel: tpu_custom_call.1
$region0: #{tpu_custom_call.1}
  #allocation0 [shape = 'u32[]', space=smem, size = 0x4, offset = 0x4, fixed_abs, tag = 'smem constant byte address 0x4 - core index']
  #allocation1 [shape = 'u32[144,128]{1,0:T(1,128)}', space=vmem, size = 0x12000, scoped, tag = 'internal scratch']
  %s0 = inlined_call_operand.hbm [shape: f32[16,128], index: 0, kind: input, shape index: {}]
  %s1 = inlined_call_operand.hbm [shape: f32[8,128], index: 1, kind: input, shape index: {}]
  %s2 = inlined_call_operand.hbm [shape: f32[16,128], index: 2, kind: output, shape index: {}]
  %s3 = sld [smem:[#allocation0]]
  $region49: #{tpu_custom_call.1} parent=0
    _
  %s5 = ssub.s32 1, %s3
  %s6 = scalar_select 0, %s5, %s3
  $region1: #{tpu_custom_call.1} parent=0
    #allocation2 [shape = 'u8[8192]{0}', space=vmem, size = 0x2000, scoped, tag = 'input window, operand 0']
    #allocation3 [shape = 's32[2]{0}', space=sflag, size = 0x8, scoped, tag = 'scoped memory for tpu_custom_call.1']
    #allocation4 [shape = 's32[2]{0}', space=sflag, size = 0x8, scoped, tag = 'scoped memory for tpu_custom_call.1']
    #allocation5 [shape = 'u8[4096]{0}', space=vmem, size = 0x1000, scoped, tag = 'input window, operand 1, single buffered']
    #allocation6 [shape = 's32[1]{0}', space=sflag, size = 0x4, scoped, tag = 'scoped memory for tpu_custom_call.1']
    #allocation7 [shape = 'u8[8192]{0}', space=vmem, size = 0x2000, scoped, tag = 'output window, operand 0']
    %7 = vsyncpa [#allocation3], 0
    %s8 = scalar_lea.sflag [#allocation3], 1
    %9 = vsyncpa %s8, 0
    %10 = vsyncpa [#allocation6], 0
    %11 = vsyncpa [#allocation4], 0
    %s12 = scalar_lea.sflag [#allocation4], 1
    %13 = vsyncpa %s12, 0
    loop: start=0, step=1, limit=4
    $region2: #{tpu_custom_call.1} parent=1 // loop_pre_header
      _
    $region3: #{tpu_custom_call.1} parent=1 // loop_header
      %s15 = sphi 0, %s19
      %p16 = scmp.ge.s32.totalorder %s15, 4
      %s25 = sphi 0, %s27
      %s28 = sphi 0, %s25
      %s29 = sphi 0, %s28
      %s45 = sphi 0, %s29
      %s49 = sphi 0, %s49
      %s51 = sphi 0, %s49
      %s52 = sphi 0, %s51
      %s66 = sphi 0, %s52
      %s72 = sphi 0, %s74
      %s75 = sphi 0, %s72
      %s76 = sphi 0, %s75
      %s92 = sphi 0, %s76
    $region4: #{tpu_custom_call.1} parent=1 // loop_header_branch
      %18 = sbr.rel (%p16) target = $region8
    $region5: #{tpu_custom_call.1} parent=1 // loop_body
      %s20 = ssub.s32 %s15, 1
      %s21 = ssub.s32 %s15, 2
      %s22 = sadd.s32 %s15, 1
      %s23 = ssub.s32 %s15, %s22
      %p24 = scmp.eq.s32.totalorder %s23, 0
      %s26 = sadd.s32 %s25, 1
      %s27 = scalar_select %p24, %s25, %s26
      %p30 = pneg %p24
      %p31 = scmp.eq.s32.totalorder %s15, 1
      %p32 = por %p30, %p31
      %p33 = scmp.ne.s32.totalorder %s25, %s28
      %p34 = scmp.eq.s32.totalorder %s15, 0
      %p35 = por %p33, %p34
      %p36 = scmp.ne.s32.totalorder %s25, %s28
      %p37 = scmp.eq.s32.totalorder %s20, 1
      %p38 = por %p36, %p37
      %p39 = scmp.ne.s32.totalorder %s28, %s29
      %p40 = scmp.eq.s32.totalorder %s20, 0
      %p41 = por %p39, %p40
      %p42 = scmp.ne.s32.totalorder %s28, %s29
      %p43 = scmp.eq.s32.totalorder %s21, 1
      %p44 = por %p42, %p43
      %p46 = scmp.ne.s32.totalorder %s29, %s45
      %p47 = scmp.eq.s32.totalorder %s21, 0
      %p48 = por %p46, %p47
      %s50 = sadd.s32 %s49, 1
      %p53 = scmp.eq.s32.totalorder %s15, 1
      %p54 = scmp.ne.s32.totalorder %s49, %s51
      %p55 = scmp.eq.s32.totalorder %s15, 0
      %p56 = por %p54, %p55
      %p57 = scmp.ne.s32.totalorder %s49, %s51
      %p58 = scmp.eq.s32.totalorder %s20, 1
      %p59 = por %p57, %p58
      %p60 = scmp.ne.s32.totalorder %s51, %s52
      %p61 = scmp.eq.s32.totalorder %s20, 0
      %p62 = por %p60, %p61
      %p63 = scmp.ne.s32.totalorder %s51, %s52
      %p64 = scmp.eq.s32.totalorder %s21, 1
      %p65 = por %p63, %p64
      %p67 = scmp.ne.s32.totalorder %s52, %s66
      %p68 = scmp.eq.s32.totalorder %s21, 0
      %p69 = por %p67, %p68
      %s70 = ssub.s32 %s15, %s22
      %p71 = scmp.eq.s32.totalorder %s70, 0
      %s73 = sadd.s32 %s72, 1
      %s74 = scalar_select %p71, %s72, %s73
      %p77 = pneg %p71
      %p78 = scmp.eq.s32.totalorder %s15, 1
      %p79 = por %p77, %p78
      %p80 = scmp.ne.s32.totalorder %s72, %s75
      %p81 = scmp.eq.s32.totalorder %s15, 0
      %p82 = por %p80, %p81
      %p83 = scmp.ne.s32.totalorder %s72, %s75
      %p84 = scmp.eq.s32.totalorder %s20, 1
      %p85 = por %p83, %p84
      %p86 = scmp.ne.s32.totalorder %s75, %s76
      %p87 = scmp.eq.s32.totalorder %s20, 0
      %p88 = por %p86, %p87
      %p89 = scmp.ne.s32.totalorder %s75, %s76
      %p90 = scmp.eq.s32.totalorder %s21, 1
      %p91 = por %p89, %p90
      %p93 = scmp.ne.s32.totalorder %s76, %s92
      %p94 = scmp.eq.s32.totalorder %s21, 0
      %p95 = por %p93, %p94
      %p96 = scmp.le.s32.totalorder 1, %s15
      %p97 = scmp.lt.s32.totalorder %s15, 3
      %p98 = pnand %p96, %p97
      %p99 = pneg %p98
      // Predicated region
      $region9: #{tpu_custom_call.1} parent=5 // pred_check
        _
      $region10: #{tpu_custom_call.1} parent=5 // pred_check_branch
        %101 = sbr.rel (%p98) target = $region12
      $region11: #{tpu_custom_call.1} parent=5 // pred_region
        %s102 = ssub.s32 %s15, 1
        // Predicated region
        $region13: #{tpu_custom_call.1} parent=11 // pred_check
          %p103 = pneg %p62
        $region14: #{tpu_custom_call.1} parent=11 // pred_check_branch
          %105 = sbr.rel (%p103) target = $region16
        $region15: #{tpu_custom_call.1} parent=11 // pred_region
          %s107 = ssub.s32 128, 128
          %108 = vsyncadd [#allocation6], %s107
          %s110 = sshll.u32 [#allocation5], 4
          %s111 = int_to_ptr.vmem [resolvable:$true] %s110
          %113 = dma.hbm_to_vmem [thread:$0]  %s1, 128, %s111, [#allocation6]
        $region16: #{tpu_custom_call.1} parent=11 // pred_fallthru
          _
      $region12: #{tpu_custom_call.1} parent=5 // pred_fallthru
        _
      %p114 = scmp.lt.s32.totalorder %s15, 2
      // Predicated region
      $region17: #{tpu_custom_call.1} parent=5 // pred_check
        %p115 = pneg %p114
      $region18: #{tpu_custom_call.1} parent=5 // pred_check_branch
        %117 = sbr.rel (%p115) target = $region20
      $region19: #{tpu_custom_call.1} parent=5 // pred_region
        // Predicated region
        $region21: #{tpu_custom_call.1} parent=19 // pred_check
          %p118 = pneg %p35
        $region22: #{tpu_custom_call.1} parent=19 // pred_check_branch
          %120 = sbr.rel (%p118) target = $region24
        $region23: #{tpu_custom_call.1} parent=19 // pred_region
          %s121 = sand.u32 %s25, 1
          %s122 = scalar_lea.sflag [#allocation3], %s121
          %s123 = sand.u32 %s25, 1
          %s124 = smul.addr %s123, 8
          %s125 = scalar_lea.vmem [#allocation2], %s124
          %s127 = ssub.s32 128, 128
          %128 = vsyncadd %s122, %s127
          %s129 = smul.addr %s15, 128
          %s130 = scalar_lea.hbm %s0, %s129
          %s132 = sshll.u32 %s125, 4
          %s133 = int_to_ptr.vmem [resolvable:$true] %s132
          %135 = dma.hbm_to_vmem [thread:$0]  %s130, 128, %s133, %s122
        $region24: #{tpu_custom_call.1} parent=19 // pred_fallthru
          _
      $region20: #{tpu_custom_call.1} parent=5 // pred_fallthru
        _
      %p136 = scmp.le.s32.totalorder 1, %s15
      %p137 = scmp.lt.s32.totalorder %s15, 3
      %p138 = pnand %p136, %p137
      %p139 = pneg %p138
      // Predicated region
      $region25: #{tpu_custom_call.1} parent=5 // pred_check
        _
      $region26: #{tpu_custom_call.1} parent=5 // pred_check_branch
        %141 = sbr.rel (%p138) target = $region28
      $region27: #{tpu_custom_call.1} parent=5 // pred_region
        %s142 = ssub.s32 %s15, 1
        %s143 = sand.u32 %s28, 1
        %s144 = scalar_lea.sflag [#allocation3], %s143
        %s145 = sand.u32 %s28, 1
        %s146 = smul.addr %s145, 8
        %s147 = scalar_lea.vmem [#allocation2], %s146
        // Predicated region
        $region29: #{tpu_custom_call.1} parent=27 // pred_check
          %p148 = pneg %p41
        $region30: #{tpu_custom_call.1} parent=27 // pred_check_branch
          %150 = sbr.rel (%p148) target = $region32
        $region31: #{tpu_custom_call.1} parent=27 // pred_region
          %151 = dma.done %s144, 128
        $region32: #{tpu_custom_call.1} parent=27 // pred_fallthru
          _
        // Predicated region
        $region33: #{tpu_custom_call.1} parent=27 // pred_check
          %p152 = pneg %p62
        $region34: #{tpu_custom_call.1} parent=27 // pred_check_branch
          %154 = sbr.rel (%p152) target = $region36
        $region35: #{tpu_custom_call.1} parent=27 // pred_region
          %155 = dma.done [#allocation6], 128
        $region36: #{tpu_custom_call.1} parent=27 // pred_fallthru
          _
        %s156 = sand.u32 %s28, 1
        %s157 = scalar_lea.sflag [#allocation3], %s156
        %s158 = sand.u32 %s28, 1
        %s159 = smul.addr %s158, 8
        %s160 = scalar_lea.vmem [#allocation2], %s159
        %p161 = pneg %p41
        %p162 = pneg %p38
        %p163 = pneg %p62
        %p164 = pneg %p59
        %p165 = pneg %p88
        %p166 = pneg %p85
        %s167 = sand.u32 %s75, 1
        %s168 = scalar_lea.sflag [#allocation4], %s167
        %s169 = sand.u32 %s75, 1
        %s170 = smul.addr %s169, 8
        %s171 = scalar_lea.vmem [#allocation7], %s170
        %v172 = vld [vmem:[%s147] sm:$0xff]
        %v173 = vld [vmem:[#allocation5] sm:$0xff]
        %v174 = vadd.f32 %v172, %v173
        %175 = vst [vmem:[%s171] sm:$0xff] %v174
        %s176 = sand.u32 %s75, 1
        %s177 = scalar_lea.sflag [#allocation4], %s176
        %s178 = sand.u32 %s75, 1
        %s179 = smul.addr %s178, 8
        %s180 = scalar_lea.vmem [#allocation7], %s179
        // Predicated region
        $region37: #{tpu_custom_call.1} parent=27 // pred_check
          %p181 = pneg %p85
        $region38: #{tpu_custom_call.1} parent=27 // pred_check_branch
          %183 = sbr.rel (%p181) target = $region40
        $region39: #{tpu_custom_call.1} parent=27 // pred_region
          %s185 = ssub.s32 128, 128
          %186 = vsyncadd %s177, %s185
          %s187 = smul.addr %s20, 128
          %s188 = scalar_lea.hbm %s2, %s187
          %s190 = sshll.u32 %s180, 4
          %s191 = int_to_ptr.vmem [resolvable:$true] %s190
          %193 = dma.vmem_to_hbm [thread:$0]  %s191, 128, %s188, %s177
        $region40: #{tpu_custom_call.1} parent=27 // pred_fallthru
          _
      $region28: #{tpu_custom_call.1} parent=5 // pred_fallthru
        _
      %p194 = scmp.le.s32.totalorder 2, %s15
      // Predicated region
      $region41: #{tpu_custom_call.1} parent=5 // pred_check
        %p195 = pneg %p194
      $region42: #{tpu_custom_call.1} parent=5 // pred_check_branch
        %197 = sbr.rel (%p195) target = $region44
      $region43: #{tpu_custom_call.1} parent=5 // pred_region
        %s198 = ssub.s32 %s15, 2
        // Predicated region
        $region45: #{tpu_custom_call.1} parent=43 // pred_check
          %p199 = pneg %p91
        $region46: #{tpu_custom_call.1} parent=43 // pred_check_branch
          %201 = sbr.rel (%p199) target = $region48
        $region47: #{tpu_custom_call.1} parent=43 // pred_region
          %s202 = sand.u32 %s76, 1
          %s203 = scalar_lea.sflag [#allocation4], %s202
          %s204 = sand.u32 %s76, 1
          %s205 = smul.addr %s204, 8
          %s206 = scalar_lea.vmem [#allocation7], %s205
          %207 = dma.done %s203, 128
        $region48: #{tpu_custom_call.1} parent=43 // pred_fallthru
          _
      $region44: #{tpu_custom_call.1} parent=5 // pred_fallthru
        _
    $region6: #{tpu_custom_call.1} parent=1 // loop_footer
      %s19 = sadd.s32 1, %s15
    $region7: #{tpu_custom_call.1} parent=1 // loop_footer_branch
      %14 = sbr.rel target = $region3
    $region8: #{tpu_custom_call.1} parent=1 // loop_exit
      _
    %208 = vsyncpa [#allocation3], 1
    %s209 = scalar_lea.sflag [#allocation3], 1
    %210 = vsyncpa %s209, 1
    %211 = vsyncpa [#allocation6], 1
    %212 = vsyncpa [#allocation4], 1
    %s213 = scalar_lea.sflag [#allocation4], 1
    %214 = vsyncpa %s213, 1

// kernel: tpu_custom_call.1
$region0: #{tpu_custom_call.1}
  #allocation0 [shape = 'u32[]', space=smem, size = 0x4, offset = 0x4, fixed_abs, tag = 'smem constant byte address 0x4 - core index']
  #allocation1 [shape = 'u32[144,128]{1,0:T(1,128)}', space=vmem, size = 0x12000, scoped, tag = 'internal scratch']
  %s0 = inlined_call_operand.vmem [shape: bf16[8,262,1], index: 0, kind: input, shape index: {}]
  %s1 = inlined_call_operand.vmem [shape: bf16[7,1,32], index: 1, kind: input, shape index: {}]
  %s2 = inlined_call_operand.vmem [shape: f32[1,32], index: 2, kind: input, shape index: {}]
  %s3 = inlined_call_operand.vmem [shape: bf16[8,256,32], index: 3, kind: output, shape index: {}]
  %s4 = sld [smem:[#allocation0]]
  $region45: #{tpu_custom_call.1} parent=0
    _
  %s6 = ssub.s32 1, %s4
  %s7 = scalar_select 0, %s6, %s4
  loop: start=0, step=1, limit=10
  $region2: #{tpu_custom_call.1} parent=0 // loop_pre_header
    _
  $region3: #{tpu_custom_call.1} parent=0 // loop_header
    %s9 = sphi 0, %s13
    %p10 = scmp.ge.s32.totalorder %s9, 10
    %s19 = sphi 0, %s21
    %s22 = sphi 0, %s19
    %s23 = sphi 0, %s22
    %s39 = sphi 0, %s23
    %s43 = sphi 0, %s43
    %s45 = sphi 0, %s43
    %s46 = sphi 0, %s45
    %s60 = sphi 0, %s46
    %s64 = sphi 0, %s64
    %s66 = sphi 0, %s64
    %s67 = sphi 0, %s66
    %s81 = sphi 0, %s67
    %s87 = sphi 0, %s89
    %s90 = sphi 0, %s87
    %s91 = sphi 0, %s90
    %s107 = sphi 0, %s91
  $region4: #{tpu_custom_call.1} parent=0 // loop_header_branch
    %12 = sbr.rel (%p10) target = $region8
  $region5: #{tpu_custom_call.1} parent=0 // loop_body
    %s14 = ssub.s32 %s9, 1
    %s15 = ssub.s32 %s9, 2
    %s16 = sadd.s32 %s9, 1
    %s17 = ssub.s32 %s9, %s16
    %p18 = scmp.eq.s32.totalorder %s17, 0
    %s20 = sadd.s32 %s19, 1
    %s21 = scalar_select %p18, %s19, %s20
    %p24 = pneg %p18
    %p25 = scmp.eq.s32.totalorder %s9, 7
    %p26 = por %p24, %p25
    %p27 = scmp.ne.s32.totalorder %s19, %s22
    %p28 = scmp.eq.s32.totalorder %s9, 0
    %p29 = por %p27, %p28
    %p30 = scmp.ne.s32.totalorder %s19, %s22
    %p31 = scmp.eq.s32.totalorder %s14, 7
    %p32 = por %p30, %p31
    %p33 = scmp.ne.s32.totalorder %s22, %s23
    %p34 = scmp.eq.s32.totalorder %s14, 0
    %p35 = por %p33, %p34
    %p36 = scmp.ne.s32.totalorder %s22, %s23
    %p37 = scmp.eq.s32.totalorder %s15, 7
    %p38 = por %p36, %p37
    %p40 = scmp.ne.s32.totalorder %s23, %s39
    %p41 = scmp.eq.s32.totalorder %s15, 0
    %p42 = por %p40, %p41
    %s44 = sadd.s32 %s43, 1
    %p47 = scmp.eq.s32.totalorder %s9, 7
    %p48 = scmp.ne.s32.totalorder %s43, %s45
    %p49 = scmp.eq.s32.totalorder %s9, 0
    %p50 = por %p48, %p49
    %p51 = scmp.ne.s32.totalorder %s43, %s45
    %p52 = scmp.eq.s32.totalorder %s14, 7
    %p53 = por %p51, %p52
    %p54 = scmp.ne.s32.totalorder %s45, %s46
    %p55 = scmp.eq.s32.totalorder %s14, 0
    %p56 = por %p54, %p55
    %p57 = scmp.ne.s32.totalorder %s45, %s46
    %p58 = scmp.eq.s32.totalorder %s15, 7
    %p59 = por %p57, %p58
    %p61 = scmp.ne.s32.totalorder %s46, %s60
    %p62 = scmp.eq.s32.totalorder %s15, 0
    %p63 = por %p61, %p62
    %s65 = sadd.s32 %s64, 1
    %p68 = scmp.eq.s32.totalorder %s9, 7
    %p69 = scmp.ne.s32.totalorder %s64, %s66
    %p70 = scmp.eq.s32.totalorder %s9, 0
    %p71 = por %p69, %p70
    %p72 = scmp.ne.s32.totalorder %s64, %s66
    %p73 = scmp.eq.s32.totalorder %s14, 7
    %p74 = por %p72, %p73
    %p75 = scmp.ne.s32.totalorder %s66, %s67
    %p76 = scmp.eq.s32.totalorder %s14, 0
    %p77 = por %p75, %p76
    %p78 = scmp.ne.s32.totalorder %s66, %s67
    %p79 = scmp.eq.s32.totalorder %s15, 7
    %p80 = por %p78, %p79
    %p82 = scmp.ne.s32.totalorder %s67, %s81
    %p83 = scmp.eq.s32.totalorder %s15, 0
    %p84 = por %p82, %p83
    %s85 = ssub.s32 %s9, %s16
    %p86 = scmp.eq.s32.totalorder %s85, 0
    %s88 = sadd.s32 %s87, 1
    %s89 = scalar_select %p86, %s87, %s88
    %p92 = pneg %p86
    %p93 = scmp.eq.s32.totalorder %s9, 7
    %p94 = por %p92, %p93
    %p95 = scmp.ne.s32.totalorder %s87, %s90
    %p96 = scmp.eq.s32.totalorder %s9, 0
    %p97 = por %p95, %p96
    %p98 = scmp.ne.s32.totalorder %s87, %s90
    %p99 = scmp.eq.s32.totalorder %s14, 7
    %p100 = por %p98, %p99
    %p101 = scmp.ne.s32.totalorder %s90, %s91
    %p102 = scmp.eq.s32.totalorder %s14, 0
    %p103 = por %p101, %p102
    %p104 = scmp.ne.s32.totalorder %s90, %s91
    %p105 = scmp.eq.s32.totalorder %s15, 7
    %p106 = por %p104, %p105
    %p108 = scmp.ne.s32.totalorder %s91, %s107
    %p109 = scmp.eq.s32.totalorder %s15, 0
    %p110 = por %p108, %p109
    %p111 = scmp.le.s32.totalorder 1, %s9
    %p112 = scmp.lt.s32.totalorder %s9, 9
    %p113 = pnand %p111, %p112
    %p114 = pneg %p113
    // Predicated region
    $region9: #{tpu_custom_call.1} parent=5 // pred_check
      _
    $region10: #{tpu_custom_call.1} parent=5 // pred_check_branch
      %116 = sbr.rel (%p113) target = $region12
    $region11: #{tpu_custom_call.1} parent=5 // pred_region
      %s117 = ssub.s32 %s9, 1
      // Predicated region
      $region13: #{tpu_custom_call.1} parent=11 // pred_check
        %p118 = pneg %p56
      $region14: #{tpu_custom_call.1} parent=11 // pred_check_branch
        %120 = sbr.rel (%p118) target = $region16
      $region15: #{tpu_custom_call.1} parent=11 // pred_region
        _
      $region16: #{tpu_custom_call.1} parent=11 // pred_fallthru
        _
      // Predicated region
      $region17: #{tpu_custom_call.1} parent=11 // pred_check
        %p121 = pneg %p77
      $region18: #{tpu_custom_call.1} parent=11 // pred_check_branch
        %123 = sbr.rel (%p121) target = $region20
      $region19: #{tpu_custom_call.1} parent=11 // pred_region
        _
      $region20: #{tpu_custom_call.1} parent=11 // pred_fallthru
        _
    $region12: #{tpu_custom_call.1} parent=5 // pred_fallthru
      _
    %p124 = scmp.lt.s32.totalorder %s9, 8
    // Predicated region
    $region21: #{tpu_custom_call.1} parent=5 // pred_check
      %p125 = pneg %p124
    $region22: #{tpu_custom_call.1} parent=5 // pred_check_branch
      %127 = sbr.rel (%p125) target = $region24
    $region23: #{tpu_custom_call.1} parent=5 // pred_region
      // Predicated region
      $region25: #{tpu_custom_call.1} parent=23 // pred_check
        %p128 = pneg %p29
      $region26: #{tpu_custom_call.1} parent=23 // pred_check_branch
        %130 = sbr.rel (%p128) target = $region28
      $region27: #{tpu_custom_call.1} parent=23 // pred_region
        %p131 = scmp.lt.s32.totalorder %s9, 7
        %s132 = scalar_select %p131, %s9, 7
        %s133 = smul.addr %s132, 33
        %s134 = smul.addr %s133, 4
        %s135 = scalar_lea.vmem %s0, %s134
      $region28: #{tpu_custom_call.1} parent=23 // pred_fallthru
        _
    $region24: #{tpu_custom_call.1} parent=5 // pred_fallthru
      _
    %p136 = scmp.le.s32.totalorder 1, %s9
    %p137 = scmp.lt.s32.totalorder %s9, 9
    %p138 = pnand %p136, %p137
    %p139 = pneg %p138
    // Predicated region
    $region29: #{tpu_custom_call.1} parent=5 // pred_check
      _
    $region30: #{tpu_custom_call.1} parent=5 // pred_check_branch
      %141 = sbr.rel (%p138) target = $region32
    $region31: #{tpu_custom_call.1} parent=5 // pred_region
      %s142 = ssub.s32 %s9, 1
      %p143 = scmp.lt.s32.totalorder %s14, 7
      %s144 = scalar_select %p143, %s14, 7
      %s145 = smul.addr %s144, 33
      %s146 = smul.addr %s145, 4
      %s147 = scalar_lea.vmem %s0, %s146
      %p148 = pneg %p35
      %p149 = pneg %p32
      %p150 = pneg %p56
      %p151 = pneg %p53
      %p152 = pneg %p77
      %p153 = pneg %p74
      %p154 = pneg %p103
      %p155 = pneg %p100
      %p156 = scmp.lt.s32.totalorder %s14, 7
      %s157 = scalar_select %p156, %s14, 7
      %s158 = smul.addr %s157, 32
      %s159 = smul.addr %s158, 4
      %s160 = scalar_lea.vmem %s3, %s159
      %p161 = scmp.lt.s32.totalorder %s14, 7
      %s162 = scalar_select %p161, %s14, 7
      %s163 = smul.addr %s162, 33
      %s164 = smul.addr %s163, 4
      %s165 = scalar_lea.vmem %s0, %s164
      %p166 = scmp.lt.s32.totalorder %s14, 7
      %s167 = scalar_select %p166, %s14, 7
      %s168 = smul.addr %s167, 32
      %s169 = smul.addr %s168, 4
      %s170 = scalar_lea.vmem %s3, %s169
      %v171 = vld [vmem:[%s165] sm:$0xf]
      %v172 = vld [vmem:[%s165 + $0x4] sm:$0xf]
      %v173 = vld [vmem:[%s165 + $0x8] sm:$0xf]
      %v174 = vld [vmem:[%s165 + $0xc] sm:$0xf]
      %v175 = vld [vmem:[%s165 + $0x10] sm:$0xf]
      %v176 = vld [vmem:[%s165 + $0x14] sm:$0xf]
      %v177 = vld [vmem:[%s165 + $0x18] sm:$0xf]
      %v178 = vld [vmem:[%s165 + $0x1c] sm:$0xf]
      %v179 = vld [vmem:[%s165 + $0x20] sm:$0xf]
      %v180 = vld [vmem:[%s165 + $0x24] sm:$0xf]
      %v181 = vld [vmem:[%s165 + $0x28] sm:$0xf]
      %v182 = vld [vmem:[%s165 + $0x2c] sm:$0xf]
      %v183 = vld [vmem:[%s165 + $0x30] sm:$0xf]
      %v184 = vld [vmem:[%s165 + $0x34] sm:$0xf]
      %v185 = vld [vmem:[%s165 + $0x38] sm:$0xf]
      %v186 = vld [vmem:[%s165 + $0x3c] sm:$0xf]
      %v187 = vld [vmem:[%s165 + $0x40] sm:$0xf]
      %v188 = vld [vmem:[%s165 + $0x44] sm:$0xf]
      %v189 = vld [vmem:[%s165 + $0x48] sm:$0xf]
      %v190 = vld [vmem:[%s165 + $0x4c] sm:$0xf]
      %v191 = vld [vmem:[%s165 + $0x50] sm:$0xf]
      %v192 = vld [vmem:[%s165 + $0x54] sm:$0xf]
      %v193 = vld [vmem:[%s165 + $0x58] sm:$0xf]
      %v194 = vld [vmem:[%s165 + $0x5c] sm:$0xf]
      %v195 = vld [vmem:[%s165 + $0x60] sm:$0xf]
      %v196 = vld [vmem:[%s165 + $0x64] sm:$0xf]
      %v197 = vld [vmem:[%s165 + $0x68] sm:$0xf]
      %v198 = vld [vmem:[%s165 + $0x6c] sm:$0xf]
      %v199 = vld [vmem:[%s165 + $0x70] sm:$0xf]
      %v200 = vld [vmem:[%s165 + $0x74] sm:$0xf]
      %v201 = vld [vmem:[%s165 + $0x78] sm:$0xf]
      %v202 = vld [vmem:[%s165 + $0x7c] sm:$0xf]
      %v203 = vld [vmem:[%s165 + $0x80] sm:$0x7]
      %v204 = vld [vmem:[%s2] sm:$0x1]
      %v205 = vunpack.c.l.bf16 %v171
      %v206 = vunpack.c.l.bf16 %v172
      %v207 = vunpack.c.l.bf16 %v173
      %v208 = vunpack.c.l.bf16 %v174
      %v209 = vunpack.c.l.bf16 %v175
      %v210 = vunpack.c.l.bf16 %v176
      %v211 = vunpack.c.l.bf16 %v177
      %v212 = vunpack.c.l.bf16 %v178
      %v213 = vunpack.c.l.bf16 %v179
      %v214 = vunpack.c.l.bf16 %v180
      %v215 = vunpack.c.l.bf16 %v181
      %v216 = vunpack.c.l.bf16 %v182
      %v217 = vunpack.c.l.bf16 %v183
      %v218 = vunpack.c.l.bf16 %v184
      %v219 = vunpack.c.l.bf16 %v185
      %v220 = vunpack.c.l.bf16 %v186
      %v221 = vunpack.c.l.bf16 %v187
      %v222 = vunpack.c.l.bf16 %v188
      %v223 = vunpack.c.l.bf16 %v189
      %v224 = vunpack.c.l.bf16 %v190
      %v225 = vunpack.c.l.bf16 %v191
      %v226 = vunpack.c.l.bf16 %v192
      %v227 = vunpack.c.l.bf16 %v193
      %v228 = vunpack.c.l.bf16 %v194
      %v229 = vunpack.c.l.bf16 %v195
      %v230 = vunpack.c.l.bf16 %v196
      %v231 = vunpack.c.l.bf16 %v197
      %v232 = vunpack.c.l.bf16 %v198
      %v233 = vunpack.c.l.bf16 %v199
      %v234 = vunpack.c.l.bf16 %v200
      %v235 = vunpack.c.l.bf16 %v201
      %v236 = vunpack.c.l.bf16 %v202
      %v237 = vld [vmem:[%s1] sm:$0x1]
      %v238 = vunpack.c.l.bf16 %v237
      %240 = vset.pattern.permute.xlu0 0
      %241 = vperm.xlu0 %240, %v205
      %v242 = vpop.permute.xlu0 %241
      %245 = vset.pattern.permute.xlu0 0
      %246 = vperm.xlu0 %245, %v206
      %v247 = vpop.permute.xlu0 %246
      %250 = vset.pattern.permute.xlu0 0
      %251 = vperm.xlu0 %250, %v207
      %v252 = vpop.permute.xlu0 %251
      %255 = vset.pattern.permute.xlu0 0
      %256 = vperm.xlu0 %255, %v208
      %v257 = vpop.permute.xlu0 %256
      %260 = vset.pattern.permute.xlu0 0
      %261 = vperm.xlu0 %260, %v209
      %v262 = vpop.permute.xlu0 %261
      %265 = vset.pattern.permute.xlu0 0
      %266 = vperm.xlu0 %265, %v210
      %v267 = vpop.permute.xlu0 %266
      %270 = vset.pattern.permute.xlu0 0
      %271 = vperm.xlu0 %270, %v211
      %v272 = vpop.permute.xlu0 %271
      %275 = vset.pattern.permute.xlu0 0
      %276 = vperm.xlu0 %275, %v212
      %v277 = vpop.permute.xlu0 %276
      %280 = vset.pattern.permute.xlu0 0
      %281 = vperm.xlu0 %280, %v213
      %v282 = vpop.permute.xlu0 %281
      %285 = vset.pattern.permute.xlu0 0
      %286 = vperm.xlu0 %285, %v214
      %v287 = vpop.permute.xlu0 %286
      %290 = vset.pattern.permute.xlu0 0
      %291 = vperm.xlu0 %290, %v215
      %v292 = vpop.permute.xlu0 %291
      %295 = vset.pattern.permute.xlu0 0
      %296 = vperm.xlu0 %295, %v216
      %v297 = vpop.permute.xlu0 %296
      %300 = vset.pattern.permute.xlu0 0
      %301 = vperm.xlu0 %300, %v217
      %v302 = vpop.permute.xlu0 %301
      %305 = vset.pattern.permute.xlu0 0
      %306 = vperm.xlu0 %305, %v218
      %v307 = vpop.permute.xlu0 %306
      %310 = vset.pattern.permute.xlu0 0
      %311 = vperm.xlu0 %310, %v219
      %v312 = vpop.permute.xlu0 %311
      %315 = vset.pattern.permute.xlu0 0
      %316 = vperm.xlu0 %315, %v220
      %v317 = vpop.permute.xlu0 %316
      %320 = vset.pattern.permute.xlu0 0
      %321 = vperm.xlu0 %320, %v221
      %v322 = vpop.permute.xlu0 %321
      %325 = vset.pattern.permute.xlu0 0
      %326 = vperm.xlu0 %325, %v222
      %v327 = vpop.permute.xlu0 %326
      %330 = vset.pattern.permute.xlu0 0
      %331 = vperm.xlu0 %330, %v223
      %v332 = vpop.permute.xlu0 %331
      %335 = vset.pattern.permute.xlu0 0
      %336 = vperm.xlu0 %335, %v224
      %v337 = vpop.permute.xlu0 %336
      %340 = vset.pattern.permute.xlu0 0
      %341 = vperm.xlu0 %340, %v225
      %v342 = vpop.permute.xlu0 %341
      %345 = vset.pattern.permute.xlu0 0
      %346 = vperm.xlu0 %345, %v226
      %v347 = vpop.permute.xlu0 %346
      %350 = vset.pattern.permute.xlu0 0
      %351 = vperm.xlu0 %350, %v227
      %v352 = vpop.permute.xlu0 %351
      %355 = vset.pattern.permute.xlu0 0
      %356 = vperm.xlu0 %355, %v228
      %v357 = vpop.permute.xlu0 %356
      %360 = vset.pattern.permute.xlu0 0
      %361 = vperm.xlu0 %360, %v229
      %v362 = vpop.permute.xlu0 %361
      %365 = vset.pattern.permute.xlu0 0
      %366 = vperm.xlu0 %365, %v230
      %v367 = vpop.permute.xlu0 %366
      %370 = vset.pattern.permute.xlu0 0
      %371 = vperm.xlu0 %370, %v231
      %v372 = vpop.permute.xlu0 %371
      %375 = vset.pattern.permute.xlu0 0
      %376 = vperm.xlu0 %375, %v232
      %v377 = vpop.permute.xlu0 %376
      %380 = vset.pattern.permute.xlu0 0
      %381 = vperm.xlu0 %380, %v233
      %v382 = vpop.permute.xlu0 %381
      %385 = vset.pattern.permute.xlu0 0
      %386 = vperm.xlu0 %385, %v234
      %v387 = vpop.permute.xlu0 %386
      %390 = vset.pattern.permute.xlu0 0
      %391 = vperm.xlu0 %390, %v235
      %v392 = vpop.permute.xlu0 %391
      %395 = vset.pattern.permute.xlu0 0
      %396 = vperm.xlu0 %395, %v236
      %v397 = vpop.permute.xlu0 %396
      %v399 = vlaneseq
      %v400 = vshrl.u32 %v399, 7
      %v401 = vsub.s32 0, %v400
      %v402 = vrot.slane %v238, %v401
      %v403 = vmul.f32 %v242, %v402
      %v404 = vmul.f32 %v247, %v402
      %v405 = vmul.f32 %v252, %v402
      %v406 = vmul.f32 %v257, %v402
      %v407 = vmul.f32 %v262, %v402
      %v408 = vmul.f32 %v267, %v402
      %v409 = vmul.f32 %v272, %v402
      %v410 = vmul.f32 %v277, %v402
      %v411 = vmul.f32 %v282, %v402
      %v412 = vmul.f32 %v287, %v402
      %v413 = vmul.f32 %v292, %v402
      %v414 = vmul.f32 %v297, %v402
      %v415 = vmul.f32 %v302, %v402
      %v416 = vmul.f32 %v307, %v402
      %v417 = vmul.f32 %v312, %v402
      %v418 = vmul.f32 %v317, %v402
      %v419 = vmul.f32 %v322, %v402
      %v420 = vmul.f32 %v327, %v402
      %v421 = vmul.f32 %v332, %v402
      %v422 = vmul.f32 %v337, %v402
      %v423 = vmul.f32 %v342, %v402
      %v424 = vmul.f32 %v347, %v402
      %v425 = vmul.f32 %v352, %v402
      %v426 = vmul.f32 %v357, %v402
      %v427 = vmul.f32 %v362, %v402
      %v428 = vmul.f32 %v367, %v402
      %v429 = vmul.f32 %v372, %v402
      %v430 = vmul.f32 %v377, %v402
      %v431 = vmul.f32 %v382, %v402
      %v432 = vmul.f32 %v387, %v402
      %v433 = vmul.f32 %v392, %v402
      %v434 = vmul.f32 %v397, %v402
      %v436 = vlaneseq
      %v437 = vshrl.u32 %v436, 7
      %v438 = vsub.s32 0, %v437
      %v439 = vrot.slane %v204, %v438
      %v441 = vadd.f32 %v439, %v403
      %v442 = vadd.f32 %v439, %v404
      %v443 = vadd.f32 %v439, %v405
      %v444 = vadd.f32 %v439, %v406
      %v445 = vadd.f32 %v439, %v407
      %v446 = vadd.f32 %v439, %v408
      %v447 = vadd.f32 %v439, %v409
      %v448 = vadd.f32 %v439, %v410
      %v449 = vadd.f32 %v439, %v411
      %v450 = vadd.f32 %v439, %v412
      %v451 = vadd.f32 %v439, %v413
      %v452 = vadd.f32 %v439, %v414
      %v453 = vadd.f32 %v439, %v415
      %v454 = vadd.f32 %v439, %v416
      %v455 = vadd.f32 %v439, %v417
      %v456 = vadd.f32 %v439, %v418
      %v457 = vadd.f32 %v439, %v419
      %v458 = vadd.f32 %v439, %v420
      %v459 = vadd.f32 %v439, %v421
      %v460 = vadd.f32 %v439, %v422
      %v461 = vadd.f32 %v439, %v423
      %v462 = vadd.f32 %v439, %v424
      %v463 = vadd.f32 %v439, %v425
      %v464 = vadd.f32 %v439, %v426
      %v465 = vadd.f32 %v439, %v427
      %v466 = vadd.f32 %v439, %v428
      %v467 = vadd.f32 %v439, %v429
      %v468 = vadd.f32 %v439, %v430
      %v469 = vadd.f32 %v439, %v431
      %v470 = vadd.f32 %v439, %v432
      %v471 = vadd.f32 %v439, %v433
      %v472 = vadd.f32 %v439, %v434
      %v473 = vunpack.c.l.bf16 %v203
      %s474 = scalar_lea.vmem %s1, 1
      %v475 = vld [vmem:[%s474] sm:$0x1]
      %v476 = vunpack.c.l.bf16 %v475
      %478 = vset.pattern.permute.xlu0 0
      %479 = vperm.xlu0 %478, %v473
      %v480 = vpop.permute.xlu0 %479
      %v482 = vlaneseq
      %v483 = vshrl.u32 %v482, 7
      %v484 = vsub.s32 0, %v483
      %v485 = vrot.slane %v476, %v484
      %v486 = vmul.f32 %v242, %v485
      %v487 = vmul.f32 %v247, %v485
      %v488 = vmul.f32 %v252, %v485
      %v489 = vmul.f32 %v257, %v485
      %v490 = vmul.f32 %v262, %v485
      %v491 = vmul.f32 %v267, %v485
      %v492 = vmul.f32 %v272, %v485
      %v493 = vmul.f32 %v277, %v485
      %v494 = vmul.f32 %v282, %v485
      %v495 = vmul.f32 %v287, %v485
      %v496 = vmul.f32 %v292, %v485
      %v497 = vmul.f32 %v297, %v485
      %v498 = vmul.f32 %v302, %v485
      %v499 = vmul.f32 %v307, %v485
      %v500 = vmul.f32 %v312, %v485
      %v501 = vmul.f32 %v317, %v485
      %v502 = vmul.f32 %v322, %v485
      %v503 = vmul.f32 %v327, %v485
      %v504 = vmul.f32 %v332, %v485
      %v505 = vmul.f32 %v337, %v485
      %v506 = vmul.f32 %v342, %v485
      %v507 = vmul.f32 %v347, %v485
      %v508 = vmul.f32 %v352, %v485
      %v509 = vmul.f32 %v357, %v485
      %v510 = vmul.f32 %v362, %v485
      %v511 = vmul.f32 %v367, %v485
      %v512 = vmul.f32 %v372, %v485
      %v513 = vmul.f32 %v377, %v485
      %v514 = vmul.f32 %v382, %v485
      %v515 = vmul.f32 %v387, %v485
      %v516 = vmul.f32 %v392, %v485
      %v517 = vmul.f32 %v397, %v485
      %v518 = vmul.f32 %v480, %v485
      %vm552 = vcmask 1046528
      %v553 = vrot.slane %v486, 1
      %v554 = vrot.slane %v487, 1
      %v555 = vsel %vm552, %v553, %v554
      %v556 = vrot.slane %v488, 1
      %v557 = vsel %vm552, %v554, %v556
      %v558 = vrot.slane %v489, 1
      %v559 = vsel %vm552, %v556, %v558
      %v560 = vrot.slane %v490, 1
      %v561 = vsel %vm552, %v558, %v560
      %v562 = vrot.slane %v491, 1
      %v563 = vsel %vm552, %v560, %v562
      %v564 = vrot.slane %v492, 1
      %v565 = vsel %vm552, %v562, %v564
      %v566 = vrot.slane %v493, 1
      %v567 = vsel %vm552, %v564, %v566
      %v568 = vrot.slane %v494, 1
      %v569 = vsel %vm552, %v566, %v568
      %v570 = vrot.slane %v495, 1
      %v571 = vsel %vm552, %v568, %v570
      %v572 = vrot.slane %v496, 1
      %v573 = vsel %vm552, %v570, %v572
      %v574 = vrot.slane %v497, 1
      %v575 = vsel %vm552, %v572, %v574
      %v576 = vrot.slane %v498, 1
      %v577 = vsel %vm552, %v574, %v576
      %v578 = vrot.slane %v499, 1
      %v579 = vsel %vm552, %v576, %v578
      %v580 = vrot.slane %v500, 1
      %v581 = vsel %vm552, %v578, %v580
      %v582 = vrot.slane %v501, 1
      %v583 = vsel %vm552, %v580, %v582
      %v584 = vrot.slane %v502, 1
      %v585 = vsel %vm552, %v582, %v584
      %v586 = vrot.slane %v503, 1
      %v587 = vsel %vm552, %v584, %v586
      %v588 = vrot.slane %v504, 1
      %v589 = vsel %vm552, %v586, %v588
      %v590 = vrot.slane %v505, 1
      %v591 = vsel %vm552, %v588, %v590
      %v592 = vrot.slane %v506, 1
      %v593 = vsel %vm552, %v590, %v592
      %v594 = vrot.slane %v507, 1
      %v595 = vsel %vm552, %v592, %v594
      %v596 = vrot.slane %v508, 1
      %v597 = vsel %vm552, %v594, %v596
      %v598 = vrot.slane %v509, 1
      %v599 = vsel %vm552, %v596, %v598
      %v600 = vrot.slane %v510, 1
      %v601 = vsel %vm552, %v598, %v600
      %v602 = vrot.slane %v511, 1
      %v603 = vsel %vm552, %v600, %v602
      %v604 = vrot.slane %v512, 1
      %v605 = vsel %vm552, %v602, %v604
      %v606 = vrot.slane %v513, 1
      %v607 = vsel %vm552, %v604, %v606
      %v608 = vrot.slane %v514, 1
      %v609 = vsel %vm552, %v606, %v608
      %v610 = vrot.slane %v515, 1
      %v611 = vsel %vm552, %v608, %v610
      %v612 = vrot.slane %v516, 1
      %v613 = vsel %vm552, %v610, %v612
      %v614 = vrot.slane %v517, 1
      %v615 = vsel %vm552, %v612, %v614
      %v616 = vrot.slane %v518, 1
      %v617 = vsel %vm552, %v614, %v616
      %v650 = vadd.f32 %v441, %v555
      %v651 = vadd.f32 %v442, %v557
      %v652 = vadd.f32 %v443, %v559
      %v653 = vadd.f32 %v444, %v561
      %v654 = vadd.f32 %v445, %v563
      %v655 = vadd.f32 %v446, %v565
      %v656 = vadd.f32 %v447, %v567
      %v657 = vadd.f32 %v448, %v569
      %v658 = vadd.f32 %v449, %v571
      %v659 = vadd.f32 %v450, %v573
      %v660 = vadd.f32 %v451, %v575
      %v661 = vadd.f32 %v452, %v577
      %v662 = vadd.f32 %v453, %v579
      %v663 = vadd.f32 %v454, %v581
      %v664 = vadd.f32 %v455, %v583
      %v665 = vadd.f32 %v456, %v585
      %v666 = vadd.f32 %v457, %v587
      %v667 = vadd.f32 %v458, %v589
      %v668 = vadd.f32 %v459, %v591
      %v669 = vadd.f32 %v460, %v593
      %v670 = vadd.f32 %v461, %v595
      %v671 = vadd.f32 %v462, %v597
      %v672 = vadd.f32 %v463, %v599
      %v673 = vadd.f32 %v464, %v601
      %v674 = vadd.f32 %v465, %v603
      %v675 = vadd.f32 %v466, %v605
      %v676 = vadd.f32 %v467, %v607
      %v677 = vadd.f32 %v468, %v609
      %v678 = vadd.f32 %v469, %v611
      %v679 = vadd.f32 %v470, %v613
      %v680 = vadd.f32 %v471, %v615
      %v681 = vadd.f32 %v472, %v617
      %s682 = scalar_lea.vmem %s1, 2
      %v683 = vld [vmem:[%s682] sm:$0x1]
      %v684 = vunpack.c.l.bf16 %v683
      %v685 = vlaneseq
      %v686 = vshrl.u32 %v685, 7
      %v687 = vsub.s32 0, %v686
      %v688 = vrot.slane %v684, %v687
      %v689 = vmul.f32 %v242, %v688
      %v690 = vmul.f32 %v247, %v688
      %v691 = vmul.f32 %v252, %v688
      %v692 = vmul.f32 %v257, %v688
      %v693 = vmul.f32 %v262, %v688
      %v694 = vmul.f32 %v267, %v688
      %v695 = vmul.f32 %v272, %v688
      %v696 = vmul.f32 %v277, %v688
      %v697 = vmul.f32 %v282, %v688
      %v698 = vmul.f32 %v287, %v688
      %v699 = vmul.f32 %v292, %v688
      %v700 = vmul.f32 %v297, %v688
      %v701 = vmul.f32 %v302, %v688
      %v702 = vmul.f32 %v307, %v688
      %v703 = vmul.f32 %v312, %v688
      %v704 = vmul.f32 %v317, %v688
      %v705 = vmul.f32 %v322, %v688
      %v706 = vmul.f32 %v327, %v688
      %v707 = vmul.f32 %v332, %v688
      %v708 = vmul.f32 %v337, %v688
      %v709 = vmul.f32 %v342, %v688
      %v710 = vmul.f32 %v347, %v688
      %v711 = vmul.f32 %v352, %v688
      %v712 = vmul.f32 %v357, %v688
      %v713 = vmul.f32 %v362, %v688
      %v714 = vmul.f32 %v367, %v688
      %v715 = vmul.f32 %v372, %v688
      %v716 = vmul.f32 %v377, %v688
      %v717 = vmul.f32 %v382, %v688
      %v718 = vmul.f32 %v387, %v688
      %v719 = vmul.f32 %v392, %v688
      %v720 = vmul.f32 %v397, %v688
      %v721 = vmul.f32 %v480, %v688
      %vm755 = vcmask 1045504
      %v756 = vrot.slane %v689, 2
      %v757 = vrot.slane %v690, 2
      %v758 = vsel %vm755, %v756, %v757
      %v759 = vrot.slane %v691, 2
      %v760 = vsel %vm755, %v757, %v759
      %v761 = vrot.slane %v692, 2
      %v762 = vsel %vm755, %v759, %v761
      %v763 = vrot.slane %v693, 2
      %v764 = vsel %vm755, %v761, %v763
      %v765 = vrot.slane %v694, 2
      %v766 = vsel %vm755, %v763, %v765
      %v767 = vrot.slane %v695, 2
      %v768 = vsel %vm755, %v765, %v767
      %v769 = vrot.slane %v696, 2
      %v770 = vsel %vm755, %v767, %v769
      %v771 = vrot.slane %v697, 2
      %v772 = vsel %vm755, %v769, %v771
      %v773 = vrot.slane %v698, 2
      %v774 = vsel %vm755, %v771, %v773
      %v775 = vrot.slane %v699, 2
      %v776 = vsel %vm755, %v773, %v775
      %v777 = vrot.slane %v700, 2
      %v778 = vsel %vm755, %v775, %v777
      %v779 = vrot.slane %v701, 2
      %v780 = vsel %vm755, %v777, %v779
      %v781 = vrot.slane %v702, 2
      %v782 = vsel %vm755, %v779, %v781
      %v783 = vrot.slane %v703, 2
      %v784 = vsel %vm755, %v781, %v783
      %v785 = vrot.slane %v704, 2
      %v786 = vsel %vm755, %v783, %v785
      %v787 = vrot.slane %v705, 2
      %v788 = vsel %vm755, %v785, %v787
      %v789 = vrot.slane %v706, 2
      %v790 = vsel %vm755, %v787, %v789
      %v791 = vrot.slane %v707, 2
      %v792 = vsel %vm755, %v789, %v791
      %v793 = vrot.slane %v708, 2
      %v794 = vsel %vm755, %v791, %v793
      %v795 = vrot.slane %v709, 2
      %v796 = vsel %vm755, %v793, %v795
      %v797 = vrot.slane %v710, 2
      %v798 = vsel %vm755, %v795, %v797
      %v799 = vrot.slane %v711, 2
      %v800 = vsel %vm755, %v797, %v799
      %v801 = vrot.slane %v712, 2
      %v802 = vsel %vm755, %v799, %v801
      %v803 = vrot.slane %v713, 2
      %v804 = vsel %vm755, %v801, %v803
      %v805 = vrot.slane %v714, 2
      %v806 = vsel %vm755, %v803, %v805
      %v807 = vrot.slane %v715, 2
      %v808 = vsel %vm755, %v805, %v807
      %v809 = vrot.slane %v716, 2
      %v810 = vsel %vm755, %v807, %v809
      %v811 = vrot.slane %v717, 2
      %v812 = vsel %vm755, %v809, %v811
      %v813 = vrot.slane %v718, 2
      %v814 = vsel %vm755, %v811, %v813
      %v815 = vrot.slane %v719, 2
      %v816 = vsel %vm755, %v813, %v815
      %v817 = vrot.slane %v720, 2
      %v818 = vsel %vm755, %v815, %v817
      %v819 = vrot.slane %v721, 2
      %v820 = vsel %vm755, %v817, %v819
      %v853 = vadd.f32 %v650, %v758
      %v854 = vadd.f32 %v651, %v760
      %v855 = vadd.f32 %v652, %v762
      %v856 = vadd.f32 %v653, %v764
      %v857 = vadd.f32 %v654, %v766
      %v858 = vadd.f32 %v655, %v768
      %v859 = vadd.f32 %v656, %v770
      %v860 = vadd.f32 %v657, %v772
      %v861 = vadd.f32 %v658, %v774
      %v862 = vadd.f32 %v659, %v776
      %v863 = vadd.f32 %v660, %v778
      %v864 = vadd.f32 %v661, %v780
      %v865 = vadd.f32 %v662, %v782
      %v866 = vadd.f32 %v663, %v784
      %v867 = vadd.f32 %v664, %v786
      %v868 = vadd.f32 %v665, %v788
      %v869 = vadd.f32 %v666, %v790
      %v870 = vadd.f32 %v667, %v792
      %v871 = vadd.f32 %v668, %v794
      %v872 = vadd.f32 %v669, %v796
      %v873 = vadd.f32 %v670, %v798
      %v874 = vadd.f32 %v671, %v800
      %v875 = vadd.f32 %v672, %v802
      %v876 = vadd.f32 %v673, %v804
      %v877 = vadd.f32 %v674, %v806
      %v878 = vadd.f32 %v675, %v808
      %v879 = vadd.f32 %v676, %v810
      %v880 = vadd.f32 %v677, %v812
      %v881 = vadd.f32 %v678, %v814
      %v882 = vadd.f32 %v679, %v816
      %v883 = vadd.f32 %v680, %v818
      %v884 = vadd.f32 %v681, %v820
      %s885 = scalar_lea.vmem %s1, 3
      %v886 = vld [vmem:[%s885] sm:$0x1]
      %v887 = vunpack.c.l.bf16 %v886
      %v888 = vlaneseq
      %v889 = vshrl.u32 %v888, 7
      %v890 = vsub.s32 0, %v889
      %v891 = vrot.slane %v887, %v890
      %v892 = vmul.f32 %v242, %v891
      %v893 = vmul.f32 %v247, %v891
      %v894 = vmul.f32 %v252, %v891
      %v895 = vmul.f32 %v257, %v891
      %v896 = vmul.f32 %v262, %v891
      %v897 = vmul.f32 %v267, %v891
      %v898 = vmul.f32 %v272, %v891
      %v899 = vmul.f32 %v277, %v891
      %v900 = vmul.f32 %v282, %v891
      %v901 = vmul.f32 %v287, %v891
      %v902 = vmul.f32 %v292, %v891
      %v903 = vmul.f32 %v297, %v891
      %v904 = vmul.f32 %v302, %v891
      %v905 = vmul.f32 %v307, %v891
      %v906 = vmul.f32 %v312, %v891
      %v907 = vmul.f32 %v317, %v891
      %v908 = vmul.f32 %v322, %v891
      %v909 = vmul.f32 %v327, %v891
      %v910 = vmul.f32 %v332, %v891
      %v911 = vmul.f32 %v337, %v891
      %v912 = vmul.f32 %v342, %v891
      %v913 = vmul.f32 %v347, %v891
      %v914 = vmul.f32 %v352, %v891
      %v915 = vmul.f32 %v357, %v891
      %v916 = vmul.f32 %v362, %v891
      %v917 = vmul.f32 %v367, %v891
      %v918 = vmul.f32 %v372, %v891
      %v919 = vmul.f32 %v377, %v891
      %v920 = vmul.f32 %v382, %v891
      %v921 = vmul.f32 %v387, %v891
      %v922 = vmul.f32 %v392, %v891
      %v923 = vmul.f32 %v397, %v891
      %v924 = vmul.f32 %v480, %v891
      %vm958 = vcmask 1044480
      %v959 = vrot.slane %v892, 3
      %v960 = vrot.slane %v893, 3
      %v961 = vsel %vm958, %v959, %v960
      %v962 = vrot.slane %v894, 3
      %v963 = vsel %vm958, %v960, %v962
      %v964 = vrot.slane %v895, 3
      %v965 = vsel %vm958, %v962, %v964
      %v966 = vrot.slane %v896, 3
      %v967 = vsel %vm958, %v964, %v966
      %v968 = vrot.slane %v897, 3
      %v969 = vsel %vm958, %v966, %v968
      %v970 = vrot.slane %v898, 3
      %v971 = vsel %vm958, %v968, %v970
      %v972 = vrot.slane %v899, 3
      %v973 = vsel %vm958, %v970, %v972
      %v974 = vrot.slane %v900, 3
      %v975 = vsel %vm958, %v972, %v974
      %v976 = vrot.slane %v901, 3
      %v977 = vsel %vm958, %v974, %v976
      %v978 = vrot.slane %v902, 3
      %v979 = vsel %vm958, %v976, %v978
      %v980 = vrot.slane %v903, 3
      %v981 = vsel %vm958, %v978, %v980
      %v982 = vrot.slane %v904, 3
      %v983 = vsel %vm958, %v980, %v982
      %v984 = vrot.slane %v905, 3
      %v985 = vsel %vm958, %v982, %v984
      %v986 = vrot.slane %v906, 3
      %v987 = vsel %vm958, %v984, %v986
      %v988 = vrot.slane %v907, 3
      %v989 = vsel %vm958, %v986, %v988
      %v990 = vrot.slane %v908, 3
      %v991 = vsel %vm958, %v988, %v990
      %v992 = vrot.slane %v909, 3
      %v993 = vsel %vm958, %v990, %v992
      %v994 = vrot.slane %v910, 3
      %v995 = vsel %vm958, %v992, %v994
      %v996 = vrot.slane %v911, 3
      %v997 = vsel %vm958, %v994, %v996
      %v998 = vrot.slane %v912, 3
      %v999 = vsel %vm958, %v996, %v998
      %v1000 = vrot.slane %v913, 3
      %v1001 = vsel %vm958, %v998, %v1000
      %v1002 = vrot.slane %v914, 3
      %v1003 = vsel %vm958, %v1000, %v1002
      %v1004 = vrot.slane %v915, 3
      %v1005 = vsel %vm958, %v1002, %v1004
      %v1006 = vrot.slane %v916, 3
      %v1007 = vsel %vm958, %v1004, %v1006
      %v1008 = vrot.slane %v917, 3
      %v1009 = vsel %vm958, %v1006, %v1008
      %v1010 = vrot.slane %v918, 3
      %v1011 = vsel %vm958, %v1008, %v1010
      %v1012 = vrot.slane %v919, 3
      %v1013 = vsel %vm958, %v1010, %v1012
      %v1014 = vrot.slane %v920, 3
      %v1015 = vsel %vm958, %v1012, %v1014
      %v1016 = vrot.slane %v921, 3
      %v1017 = vsel %vm958, %v1014, %v1016
      %v1018 = vrot.slane %v922, 3
      %v1019 = vsel %vm958, %v1016, %v1018
      %v1020 = vrot.slane %v923, 3
      %v1021 = vsel %vm958, %v1018, %v1020
      %v1022 = vrot.slane %v924, 3
      %v1023 = vsel %vm958, %v1020, %v1022
      %v1056 = vadd.f32 %v853, %v961
      %v1057 = vadd.f32 %v854, %v963
      %v1058 = vadd.f32 %v855, %v965
      %v1059 = vadd.f32 %v856, %v967
      %v1060 = vadd.f32 %v857, %v969
      %v1061 = vadd.f32 %v858, %v971
      %v1062 = vadd.f32 %v859, %v973
      %v1063 = vadd.f32 %v860, %v975
      %v1064 = vadd.f32 %v861, %v977
      %v1065 = vadd.f32 %v862, %v979
      %v1066 = vadd.f32 %v863, %v981
      %v1067 = vadd.f32 %v864, %v983
      %v1068 = vadd.f32 %v865, %v985
      %v1069 = vadd.f32 %v866, %v987
      %v1070 = vadd.f32 %v867, %v989
      %v1071 = vadd.f32 %v868, %v991
      %v1072 = vadd.f32 %v869, %v993
      %v1073 = vadd.f32 %v870, %v995
      %v1074 = vadd.f32 %v871, %v997
      %v1075 = vadd.f32 %v872, %v999
      %v1076 = vadd.f32 %v873, %v1001
      %v1077 = vadd.f32 %v874, %v1003
      %v1078 = vadd.f32 %v875, %v1005
      %v1079 = vadd.f32 %v876, %v1007
      %v1080 = vadd.f32 %v877, %v1009
      %v1081 = vadd.f32 %v878, %v1011
      %v1082 = vadd.f32 %v879, %v1013
      %v1083 = vadd.f32 %v880, %v1015
      %v1084 = vadd.f32 %v881, %v1017
      %v1085 = vadd.f32 %v882, %v1019
      %v1086 = vadd.f32 %v883, %v1021
      %v1087 = vadd.f32 %v884, %v1023
      %s1088 = scalar_lea.vmem %s1, 4
      %v1089 = vld [vmem:[%s1088] sm:$0x1]
      %v1090 = vunpack.c.l.bf16 %v1089
      %v1091 = vlaneseq
      %v1092 = vshrl.u32 %v1091, 7
      %v1093 = vsub.s32 0, %v1092
      %v1094 = vrot.slane %v1090, %v1093
      %v1095 = vmul.f32 %v242, %v1094
      %v1096 = vmul.f32 %v247, %v1094
      %v1097 = vmul.f32 %v252, %v1094
      %v1098 = vmul.f32 %v257, %v1094
      %v1099 = vmul.f32 %v262, %v1094
      %v1100 = vmul.f32 %v267, %v1094
      %v1101 = vmul.f32 %v272, %v1094
      %v1102 = vmul.f32 %v277, %v1094
      %v1103 = vmul.f32 %v282, %v1094
      %v1104 = vmul.f32 %v287, %v1094
      %v1105 = vmul.f32 %v292, %v1094
      %v1106 = vmul.f32 %v297, %v1094
      %v1107 = vmul.f32 %v302, %v1094
      %v1108 = vmul.f32 %v307, %v1094
      %v1109 = vmul.f32 %v312, %v1094
      %v1110 = vmul.f32 %v317, %v1094
      %v1111 = vmul.f32 %v322, %v1094
      %v1112 = vmul.f32 %v327, %v1094
      %v1113 = vmul.f32 %v332, %v1094
      %v1114 = vmul.f32 %v337, %v1094
      %v1115 = vmul.f32 %v342, %v1094
      %v1116 = vmul.f32 %v347, %v1094
      %v1117 = vmul.f32 %v352, %v1094
      %v1118 = vmul.f32 %v357, %v1094
      %v1119 = vmul.f32 %v362, %v1094
      %v1120 = vmul.f32 %v367, %v1094
      %v1121 = vmul.f32 %v372, %v1094
      %v1122 = vmul.f32 %v377, %v1094
      %v1123 = vmul.f32 %v382, %v1094
      %v1124 = vmul.f32 %v387, %v1094
      %v1125 = vmul.f32 %v392, %v1094
      %v1126 = vmul.f32 %v397, %v1094
      %v1127 = vmul.f32 %v480, %v1094
      %vm1161 = vcmask 1043456
      %v1162 = vrot.slane %v1095, 4
      %v1163 = vrot.slane %v1096, 4
      %v1164 = vsel %vm1161, %v1162, %v1163
      %v1165 = vrot.slane %v1097, 4
      %v1166 = vsel %vm1161, %v1163, %v1165
      %v1167 = vrot.slane %v1098, 4
      %v1168 = vsel %vm1161, %v1165, %v1167
      %v1169 = vrot.slane %v1099, 4
      %v1170 = vsel %vm1161, %v1167, %v1169
      %v1171 = vrot.slane %v1100, 4
      %v1172 = vsel %vm1161, %v1169, %v1171
      %v1173 = vrot.slane %v1101, 4
      %v1174 = vsel %vm1161, %v1171, %v1173
      %v1175 = vrot.slane %v1102, 4
      %v1176 = vsel %vm1161, %v1173, %v1175
      %v1177 = vrot.slane %v1103, 4
      %v1178 = vsel %vm1161, %v1175, %v1177
      %v1179 = vrot.slane %v1104, 4
      %v1180 = vsel %vm1161, %v1177, %v1179
      %v1181 = vrot.slane %v1105, 4
      %v1182 = vsel %vm1161, %v1179, %v1181
      %v1183 = vrot.slane %v1106, 4
      %v1184 = vsel %vm1161, %v1181, %v1183
      %v1185 = vrot.slane %v1107, 4
      %v1186 = vsel %vm1161, %v1183, %v1185
      %v1187 = vrot.slane %v1108, 4
      %v1188 = vsel %vm1161, %v1185, %v1187
      %v1189 = vrot.slane %v1109, 4
      %v1190 = vsel %vm1161, %v1187, %v1189
      %v1191 = vrot.slane %v1110, 4
      %v1192 = vsel %vm1161, %v1189, %v1191
      %v1193 = vrot.slane %v1111, 4
      %v1194 = vsel %vm1161, %v1191, %v1193
      %v1195 = vrot.slane %v1112, 4
      %v1196 = vsel %vm1161, %v1193, %v1195
      %v1197 = vrot.slane %v1113, 4
      %v1198 = vsel %vm1161, %v1195, %v1197
      %v1199 = vrot.slane %v1114, 4
      %v1200 = vsel %vm1161, %v1197, %v1199
      %v1201 = vrot.slane %v1115, 4
      %v1202 = vsel %vm1161, %v1199, %v1201
      %v1203 = vrot.slane %v1116, 4
      %v1204 = vsel %vm1161, %v1201, %v1203
      %v1205 = vrot.slane %v1117, 4
      %v1206 = vsel %vm1161, %v1203, %v1205
      %v1207 = vrot.slane %v1118, 4
      %v1208 = vsel %vm1161, %v1205, %v1207
      %v1209 = vrot.slane %v1119, 4
      %v1210 = vsel %vm1161, %v1207, %v1209
      %v1211 = vrot.slane %v1120, 4
      %v1212 = vsel %vm1161, %v1209, %v1211
      %v1213 = vrot.slane %v1121, 4
      %v1214 = vsel %vm1161, %v1211, %v1213
      %v1215 = vrot.slane %v1122, 4
      %v1216 = vsel %vm1161, %v1213, %v1215
      %v1217 = vrot.slane %v1123, 4
      %v1218 = vsel %vm1161, %v1215, %v1217
      %v1219 = vrot.slane %v1124, 4
      %v1220 = vsel %vm1161, %v1217, %v1219
      %v1221 = vrot.slane %v1125, 4
      %v1222 = vsel %vm1161, %v1219, %v1221
      %v1223 = vrot.slane %v1126, 4
      %v1224 = vsel %vm1161, %v1221, %v1223
      %v1225 = vrot.slane %v1127, 4
      %v1226 = vsel %vm1161, %v1223, %v1225
      %v1259 = vadd.f32 %v1056, %v1164
      %v1260 = vadd.f32 %v1057, %v1166
      %v1261 = vadd.f32 %v1058, %v1168
      %v1262 = vadd.f32 %v1059, %v1170
      %v1263 = vadd.f32 %v1060, %v1172
      %v1264 = vadd.f32 %v1061, %v1174
      %v1265 = vadd.f32 %v1062, %v1176
      %v1266 = vadd.f32 %v1063, %v1178
      %v1267 = vadd.f32 %v1064, %v1180
      %v1268 = vadd.f32 %v1065, %v1182
      %v1269 = vadd.f32 %v1066, %v1184
      %v1270 = vadd.f32 %v1067, %v1186
      %v1271 = vadd.f32 %v1068, %v1188
      %v1272 = vadd.f32 %v1069, %v1190
      %v1273 = vadd.f32 %v1070, %v1192
      %v1274 = vadd.f32 %v1071, %v1194
      %v1275 = vadd.f32 %v1072, %v1196
      %v1276 = vadd.f32 %v1073, %v1198
      %v1277 = vadd.f32 %v1074, %v1200
      %v1278 = vadd.f32 %v1075, %v1202
      %v1279 = vadd.f32 %v1076, %v1204
      %v1280 = vadd.f32 %v1077, %v1206
      %v1281 = vadd.f32 %v1078, %v1208
      %v1282 = vadd.f32 %v1079, %v1210
      %v1283 = vadd.f32 %v1080, %v1212
      %v1284 = vadd.f32 %v1081, %v1214
      %v1285 = vadd.f32 %v1082, %v1216
      %v1286 = vadd.f32 %v1083, %v1218
      %v1287 = vadd.f32 %v1084, %v1220
      %v1288 = vadd.f32 %v1085, %v1222
      %v1289 = vadd.f32 %v1086, %v1224
      %v1290 = vadd.f32 %v1087, %v1226
      %s1291 = scalar_lea.vmem %s1, 5
      %v1292 = vld [vmem:[%s1291] sm:$0x1]
      %v1293 = vunpack.c.l.bf16 %v1292
      %v1294 = vlaneseq
      %v1295 = vshrl.u32 %v1294, 7
      %v1296 = vsub.s32 0, %v1295
      %v1297 = vrot.slane %v1293, %v1296
      %v1298 = vmul.f32 %v242, %v1297
      %v1299 = vmul.f32 %v247, %v1297
      %v1300 = vmul.f32 %v252, %v1297
      %v1301 = vmul.f32 %v257, %v1297
      %v1302 = vmul.f32 %v262, %v1297
      %v1303 = vmul.f32 %v267, %v1297
      %v1304 = vmul.f32 %v272, %v1297
      %v1305 = vmul.f32 %v277, %v1297
      %v1306 = vmul.f32 %v282, %v1297
      %v1307 = vmul.f32 %v287, %v1297
      %v1308 = vmul.f32 %v292, %v1297
      %v1309 = vmul.f32 %v297, %v1297
      %v1310 = vmul.f32 %v302, %v1297
      %v1311 = vmul.f32 %v307, %v1297
      %v1312 = vmul.f32 %v312, %v1297
      %v1313 = vmul.f32 %v317, %v1297
      %v1314 = vmul.f32 %v322, %v1297
      %v1315 = vmul.f32 %v327, %v1297
      %v1316 = vmul.f32 %v332, %v1297
      %v1317 = vmul.f32 %v337, %v1297
      %v1318 = vmul.f32 %v342, %v1297
      %v1319 = vmul.f32 %v347, %v1297
      %v1320 = vmul.f32 %v352, %v1297
      %v1321 = vmul.f32 %v357, %v1297
      %v1322 = vmul.f32 %v362, %v1297
      %v1323 = vmul.f32 %v367, %v1297
      %v1324 = vmul.f32 %v372, %v1297
      %v1325 = vmul.f32 %v377, %v1297
      %v1326 = vmul.f32 %v382, %v1297
      %v1327 = vmul.f32 %v387, %v1297
      %v1328 = vmul.f32 %v392, %v1297
      %v1329 = vmul.f32 %v397, %v1297
      %v1330 = vmul.f32 %v480, %v1297
      %vm1364 = vcmask 1042432
      %v1365 = vrot.slane %v1298, 5
      %v1366 = vrot.slane %v1299, 5
      %v1367 = vsel %vm1364, %v1365, %v1366
      %v1368 = vrot.slane %v1300, 5
      %v1369 = vsel %vm1364, %v1366, %v1368
      %v1370 = vrot.slane %v1301, 5
      %v1371 = vsel %vm1364, %v1368, %v1370
      %v1372 = vrot.slane %v1302, 5
      %v1373 = vsel %vm1364, %v1370, %v1372
      %v1374 = vrot.slane %v1303, 5
      %v1375 = vsel %vm1364, %v1372, %v1374
      %v1376 = vrot.slane %v1304, 5
      %v1377 = vsel %vm1364, %v1374, %v1376
      %v1378 = vrot.slane %v1305, 5
      %v1379 = vsel %vm1364, %v1376, %v1378
      %v1380 = vrot.slane %v1306, 5
      %v1381 = vsel %vm1364, %v1378, %v1380
      %v1382 = vrot.slane %v1307, 5
      %v1383 = vsel %vm1364, %v1380, %v1382
      %v1384 = vrot.slane %v1308, 5
      %v1385 = vsel %vm1364, %v1382, %v1384
      %v1386 = vrot.slane %v1309, 5
      %v1387 = vsel %vm1364, %v1384, %v1386
      %v1388 = vrot.slane %v1310, 5
      %v1389 = vsel %vm1364, %v1386, %v1388
      %v1390 = vrot.slane %v1311, 5
      %v1391 = vsel %vm1364, %v1388, %v1390
      %v1392 = vrot.slane %v1312, 5
      %v1393 = vsel %vm1364, %v1390, %v1392
      %v1394 = vrot.slane %v1313, 5
      %v1395 = vsel %vm1364, %v1392, %v1394
      %v1396 = vrot.slane %v1314, 5
      %v1397 = vsel %vm1364, %v1394, %v1396
      %v1398 = vrot.slane %v1315, 5
      %v1399 = vsel %vm1364, %v1396, %v1398
      %v1400 = vrot.slane %v1316, 5
      %v1401 = vsel %vm1364, %v1398, %v1400
      %v1402 = vrot.slane %v1317, 5
      %v1403 = vsel %vm1364, %v1400, %v1402
      %v1404 = vrot.slane %v1318, 5
      %v1405 = vsel %vm1364, %v1402, %v1404
      %v1406 = vrot.slane %v1319, 5
      %v1407 = vsel %vm1364, %v1404, %v1406
      %v1408 = vrot.slane %v1320, 5
      %v1409 = vsel %vm1364, %v1406, %v1408
      %v1410 = vrot.slane %v1321, 5
      %v1411 = vsel %vm1364, %v1408, %v1410
      %v1412 = vrot.slane %v1322, 5
      %v1413 = vsel %vm1364, %v1410, %v1412
      %v1414 = vrot.slane %v1323, 5
      %v1415 = vsel %vm1364, %v1412, %v1414
      %v1416 = vrot.slane %v1324, 5
      %v1417 = vsel %vm1364, %v1414, %v1416
      %v1418 = vrot.slane %v1325, 5
      %v1419 = vsel %vm1364, %v1416, %v1418
      %v1420 = vrot.slane %v1326, 5
      %v1421 = vsel %vm1364, %v1418, %v1420
      %v1422 = vrot.slane %v1327, 5
      %v1423 = vsel %vm1364, %v1420, %v1422
      %v1424 = vrot.slane %v1328, 5
      %v1425 = vsel %vm1364, %v1422, %v1424
      %v1426 = vrot.slane %v1329, 5
      %v1427 = vsel %vm1364, %v1424, %v1426
      %v1428 = vrot.slane %v1330, 5
      %v1429 = vsel %vm1364, %v1426, %v1428
      %v1462 = vadd.f32 %v1259, %v1367
      %v1463 = vadd.f32 %v1260, %v1369
      %v1464 = vadd.f32 %v1261, %v1371
      %v1465 = vadd.f32 %v1262, %v1373
      %v1466 = vadd.f32 %v1263, %v1375
      %v1467 = vadd.f32 %v1264, %v1377
      %v1468 = vadd.f32 %v1265, %v1379
      %v1469 = vadd.f32 %v1266, %v1381
      %v1470 = vadd.f32 %v1267, %v1383
      %v1471 = vadd.f32 %v1268, %v1385
      %v1472 = vadd.f32 %v1269, %v1387
      %v1473 = vadd.f32 %v1270, %v1389
      %v1474 = vadd.f32 %v1271, %v1391
      %v1475 = vadd.f32 %v1272, %v1393
      %v1476 = vadd.f32 %v1273, %v1395
      %v1477 = vadd.f32 %v1274, %v1397
      %v1478 = vadd.f32 %v1275, %v1399
      %v1479 = vadd.f32 %v1276, %v1401
      %v1480 = vadd.f32 %v1277, %v1403
      %v1481 = vadd.f32 %v1278, %v1405
      %v1482 = vadd.f32 %v1279, %v1407
      %v1483 = vadd.f32 %v1280, %v1409
      %v1484 = vadd.f32 %v1281, %v1411
      %v1485 = vadd.f32 %v1282, %v1413
      %v1486 = vadd.f32 %v1283, %v1415
      %v1487 = vadd.f32 %v1284, %v1417
      %v1488 = vadd.f32 %v1285, %v1419
      %v1489 = vadd.f32 %v1286, %v1421
      %v1490 = vadd.f32 %v1287, %v1423
      %v1491 = vadd.f32 %v1288, %v1425
      %v1492 = vadd.f32 %v1289, %v1427
      %v1493 = vadd.f32 %v1290, %v1429
      %s1494 = scalar_lea.vmem %s1, 6
      %v1495 = vld [vmem:[%s1494] sm:$0x1]
      %v1496 = vunpack.c.l.bf16 %v1495
      %v1497 = vlaneseq
      %v1498 = vshrl.u32 %v1497, 7
      %v1499 = vsub.s32 0, %v1498
      %v1500 = vrot.slane %v1496, %v1499
      %v1501 = vmul.f32 %v242, %v1500
      %v1502 = vmul.f32 %v247, %v1500
      %v1503 = vmul.f32 %v252, %v1500
      %v1504 = vmul.f32 %v257, %v1500
      %v1505 = vmul.f32 %v262, %v1500
      %v1506 = vmul.f32 %v267, %v1500
      %v1507 = vmul.f32 %v272, %v1500
      %v1508 = vmul.f32 %v277, %v1500
      %v1509 = vmul.f32 %v282, %v1500
      %v1510 = vmul.f32 %v287, %v1500
      %v1511 = vmul.f32 %v292, %v1500
      %v1512 = vmul.f32 %v297, %v1500
      %v1513 = vmul.f32 %v302, %v1500
      %v1514 = vmul.f32 %v307, %v1500
      %v1515 = vmul.f32 %v312, %v1500
      %v1516 = vmul.f32 %v317, %v1500
      %v1517 = vmul.f32 %v322, %v1500
      %v1518 = vmul.f32 %v327, %v1500
      %v1519 = vmul.f32 %v332, %v1500
      %v1520 = vmul.f32 %v337, %v1500
      %v1521 = vmul.f32 %v342, %v1500
      %v1522 = vmul.f32 %v347, %v1500
      %v1523 = vmul.f32 %v352, %v1500
      %v1524 = vmul.f32 %v357, %v1500
      %v1525 = vmul.f32 %v362, %v1500
      %v1526 = vmul.f32 %v367, %v1500
      %v1527 = vmul.f32 %v372, %v1500
      %v1528 = vmul.f32 %v377, %v1500
      %v1529 = vmul.f32 %v382, %v1500
      %v1530 = vmul.f32 %v387, %v1500
      %v1531 = vmul.f32 %v392, %v1500
      %v1532 = vmul.f32 %v397, %v1500
      %v1533 = vmul.f32 %v480, %v1500
      %vm1567 = vcmask 1041408
      %v1568 = vrot.slane %v1501, 6
      %v1569 = vrot.slane %v1502, 6
      %v1570 = vsel %vm1567, %v1568, %v1569
      %v1571 = vrot.slane %v1503, 6
      %v1572 = vsel %vm1567, %v1569, %v1571
      %v1573 = vrot.slane %v1504, 6
      %v1574 = vsel %vm1567, %v1571, %v1573
      %v1575 = vrot.slane %v1505, 6
      %v1576 = vsel %vm1567, %v1573, %v1575
      %v1577 = vrot.slane %v1506, 6
      %v1578 = vsel %vm1567, %v1575, %v1577
      %v1579 = vrot.slane %v1507, 6
      %v1580 = vsel %vm1567, %v1577, %v1579
      %v1581 = vrot.slane %v1508, 6
      %v1582 = vsel %vm1567, %v1579, %v1581
      %v1583 = vrot.slane %v1509, 6
      %v1584 = vsel %vm1567, %v1581, %v1583
      %v1585 = vrot.slane %v1510, 6
      %v1586 = vsel %vm1567, %v1583, %v1585
      %v1587 = vrot.slane %v1511, 6
      %v1588 = vsel %vm1567, %v1585, %v1587
      %v1589 = vrot.slane %v1512, 6
      %v1590 = vsel %vm1567, %v1587, %v1589
      %v1591 = vrot.slane %v1513, 6
      %v1592 = vsel %vm1567, %v1589, %v1591
      %v1593 = vrot.slane %v1514, 6
      %v1594 = vsel %vm1567, %v1591, %v1593
      %v1595 = vrot.slane %v1515, 6
      %v1596 = vsel %vm1567, %v1593, %v1595
      %v1597 = vrot.slane %v1516, 6
      %v1598 = vsel %vm1567, %v1595, %v1597
      %v1599 = vrot.slane %v1517, 6
      %v1600 = vsel %vm1567, %v1597, %v1599
      %v1601 = vrot.slane %v1518, 6
      %v1602 = vsel %vm1567, %v1599, %v1601
      %v1603 = vrot.slane %v1519, 6
      %v1604 = vsel %vm1567, %v1601, %v1603
      %v1605 = vrot.slane %v1520, 6
      %v1606 = vsel %vm1567, %v1603, %v1605
      %v1607 = vrot.slane %v1521, 6
      %v1608 = vsel %vm1567, %v1605, %v1607
      %v1609 = vrot.slane %v1522, 6
      %v1610 = vsel %vm1567, %v1607, %v1609
      %v1611 = vrot.slane %v1523, 6
      %v1612 = vsel %vm1567, %v1609, %v1611
      %v1613 = vrot.slane %v1524, 6
      %v1614 = vsel %vm1567, %v1611, %v1613
      %v1615 = vrot.slane %v1525, 6
      %v1616 = vsel %vm1567, %v1613, %v1615
      %v1617 = vrot.slane %v1526, 6
      %v1618 = vsel %vm1567, %v1615, %v1617
      %v1619 = vrot.slane %v1527, 6
      %v1620 = vsel %vm1567, %v1617, %v1619
      %v1621 = vrot.slane %v1528, 6
      %v1622 = vsel %vm1567, %v1619, %v1621
      %v1623 = vrot.slane %v1529, 6
      %v1624 = vsel %vm1567, %v1621, %v1623
      %v1625 = vrot.slane %v1530, 6
      %v1626 = vsel %vm1567, %v1623, %v1625
      %v1627 = vrot.slane %v1531, 6
      %v1628 = vsel %vm1567, %v1625, %v1627
      %v1629 = vrot.slane %v1532, 6
      %v1630 = vsel %vm1567, %v1627, %v1629
      %v1631 = vrot.slane %v1533, 6
      %v1632 = vsel %vm1567, %v1629, %v1631
      %v1665 = vadd.f32 %v1462, %v1570
      %v1666 = vadd.f32 %v1463, %v1572
      %v1667 = vadd.f32 %v1464, %v1574
      %v1668 = vadd.f32 %v1465, %v1576
      %v1669 = vadd.f32 %v1466, %v1578
      %v1670 = vadd.f32 %v1467, %v1580
      %v1671 = vadd.f32 %v1468, %v1582
      %v1672 = vadd.f32 %v1469, %v1584
      %v1673 = vadd.f32 %v1470, %v1586
      %v1674 = vadd.f32 %v1471, %v1588
      %v1675 = vadd.f32 %v1472, %v1590
      %v1676 = vadd.f32 %v1473, %v1592
      %v1677 = vadd.f32 %v1474, %v1594
      %v1678 = vadd.f32 %v1475, %v1596
      %v1679 = vadd.f32 %v1476, %v1598
      %v1680 = vadd.f32 %v1477, %v1600
      %v1681 = vadd.f32 %v1478, %v1602
      %v1682 = vadd.f32 %v1479, %v1604
      %v1683 = vadd.f32 %v1480, %v1606
      %v1684 = vadd.f32 %v1481, %v1608
      %v1685 = vadd.f32 %v1482, %v1610
      %v1686 = vadd.f32 %v1483, %v1612
      %v1687 = vadd.f32 %v1484, %v1614
      %v1688 = vadd.f32 %v1485, %v1616
      %v1689 = vadd.f32 %v1486, %v1618
      %v1690 = vadd.f32 %v1487, %v1620
      %v1691 = vadd.f32 %v1488, %v1622
      %v1692 = vadd.f32 %v1489, %v1624
      %v1693 = vadd.f32 %v1490, %v1626
      %v1694 = vadd.f32 %v1491, %v1628
      %v1695 = vadd.f32 %v1492, %v1630
      %v1696 = vadd.f32 %v1493, %v1632
      %v1697 = vpack.c.bf16 %v1666, %v1665
      %v1698 = vpack.c.bf16 %v1668, %v1667
      %v1699 = vpack.c.bf16 %v1670, %v1669
      %v1700 = vpack.c.bf16 %v1672, %v1671
      %v1701 = vpack.c.bf16 %v1674, %v1673
      %v1702 = vpack.c.bf16 %v1676, %v1675
      %v1703 = vpack.c.bf16 %v1678, %v1677
      %v1704 = vpack.c.bf16 %v1680, %v1679
      %v1705 = vpack.c.bf16 %v1682, %v1681
      %v1706 = vpack.c.bf16 %v1684, %v1683
      %v1707 = vpack.c.bf16 %v1686, %v1685
      %v1708 = vpack.c.bf16 %v1688, %v1687
      %v1709 = vpack.c.bf16 %v1690, %v1689
      %v1710 = vpack.c.bf16 %v1692, %v1691
      %v1711 = vpack.c.bf16 %v1694, %v1693
      %v1712 = vpack.c.bf16 %v1696, %v1695
      %v1729 = vunpack.c.l.b16 %v1697
      %v1730 = vunpack.c.h.b16 %v1697
      %v1731 = vunpack.c.l.b16 %v1698
      %v1732 = vunpack.c.h.b16 %v1698
      %v1733 = vunpack.c.l.b16 %v1699
      %v1734 = vunpack.c.h.b16 %v1699
      %v1735 = vunpack.c.l.b16 %v1700
      %v1736 = vunpack.c.h.b16 %v1700
      %v1737 = vunpack.c.l.b16 %v1701
      %v1738 = vunpack.c.h.b16 %v1701
      %v1739 = vunpack.c.l.b16 %v1702
      %v1740 = vunpack.c.h.b16 %v1702
      %v1741 = vunpack.c.l.b16 %v1703
      %v1742 = vunpack.c.h.b16 %v1703
      %v1743 = vunpack.c.l.b16 %v1704
      %v1744 = vunpack.c.h.b16 %v1704
      %v1745 = vunpack.c.l.b16 %v1705
      %v1746 = vunpack.c.h.b16 %v1705
      %v1747 = vunpack.c.l.b16 %v1706
      %v1748 = vunpack.c.h.b16 %v1706
      %v1749 = vunpack.c.l.b16 %v1707
      %v1750 = vunpack.c.h.b16 %v1707
      %v1751 = vunpack.c.l.b16 %v1708
      %v1752 = vunpack.c.h.b16 %v1708
      %v1753 = vunpack.c.l.b16 %v1709
      %v1754 = vunpack.c.h.b16 %v1709
      %v1755 = vunpack.c.l.b16 %v1710
      %v1756 = vunpack.c.h.b16 %v1710
      %v1757 = vunpack.c.l.b16 %v1711
      %v1758 = vunpack.c.h.b16 %v1711
      %v1759 = vunpack.c.l.b16 %v1712
      %v1760 = vunpack.c.h.b16 %v1712
      %v1761 = vpack.c.b16 %v1729, %v1729
      %v1762 = vpack.c.b16 %v1730, %v1730
      %v1763 = vpack.c.b16 %v1731, %v1731
      %v1764 = vpack.c.b16 %v1732, %v1732
      %v1765 = vpack.c.b16 %v1733, %v1733
      %v1766 = vpack.c.b16 %v1734, %v1734
      %v1767 = vpack.c.b16 %v1735, %v1735
      %v1768 = vpack.c.b16 %v1736, %v1736
      %v1769 = vpack.c.b16 %v1737, %v1737
      %v1770 = vpack.c.b16 %v1738, %v1738
      %v1771 = vpack.c.b16 %v1739, %v1739
      %v1772 = vpack.c.b16 %v1740, %v1740
      %v1773 = vpack.c.b16 %v1741, %v1741
      %v1774 = vpack.c.b16 %v1742, %v1742
      %v1775 = vpack.c.b16 %v1743, %v1743
      %v1776 = vpack.c.b16 %v1744, %v1744
      %v1777 = vpack.c.b16 %v1745, %v1745
      %v1778 = vpack.c.b16 %v1746, %v1746
      %v1779 = vpack.c.b16 %v1747, %v1747
      %v1780 = vpack.c.b16 %v1748, %v1748
      %v1781 = vpack.c.b16 %v1749, %v1749
      %v1782 = vpack.c.b16 %v1750, %v1750
      %v1783 = vpack.c.b16 %v1751, %v1751
      %v1784 = vpack.c.b16 %v1752, %v1752
      %v1785 = vpack.c.b16 %v1753, %v1753
      %v1786 = vpack.c.b16 %v1754, %v1754
      %v1787 = vpack.c.b16 %v1755, %v1755
      %v1788 = vpack.c.b16 %v1756, %v1756
      %v1789 = vpack.c.b16 %v1757, %v1757
      %v1790 = vpack.c.b16 %v1758, %v1758
      %v1791 = vpack.c.b16 %v1759, %v1759
      %v1792 = vpack.c.b16 %v1760, %v1760
      %vm1825 = vcmask 257024
      %1826 = vst.msk [vmem:[%s170] sm:$0xf] %vm1825, %v1761
      %1827 = vst.msk [vmem:[%s170 + $0x4] sm:$0xf] %vm1825, %v1762
      %1828 = vst.msk [vmem:[%s170 + $0x8] sm:$0xf] %vm1825, %v1763
      %1829 = vst.msk [vmem:[%s170 + $0xc] sm:$0xf] %vm1825, %v1764
      %1830 = vst.msk [vmem:[%s170 + $0x10] sm:$0xf] %vm1825, %v1765
      %1831 = vst.msk [vmem:[%s170 + $0x14] sm:$0xf] %vm1825, %v1766
      %1832 = vst.msk [vmem:[%s170 + $0x18] sm:$0xf] %vm1825, %v1767
      %1833 = vst.msk [vmem:[%s170 + $0x1c] sm:$0xf] %vm1825, %v1768
      %1834 = vst.msk [vmem:[%s170 + $0x20] sm:$0xf] %vm1825, %v1769
      %1835 = vst.msk [vmem:[%s170 + $0x24] sm:$0xf] %vm1825, %v1770
      %1836 = vst.msk [vmem:[%s170 + $0x28] sm:$0xf] %vm1825, %v1771
      %1837 = vst.msk [vmem:[%s170 + $0x2c] sm:$0xf] %vm1825, %v1772
      %1838 = vst.msk [vmem:[%s170 + $0x30] sm:$0xf] %vm1825, %v1773
      %1839 = vst.msk [vmem:[%s170 + $0x34] sm:$0xf] %vm1825, %v1774
      %1840 = vst.msk [vmem:[%s170 + $0x38] sm:$0xf] %vm1825, %v1775
      %1841 = vst.msk [vmem:[%s170 + $0x3c] sm:$0xf] %vm1825, %v1776
      %1842 = vst.msk [vmem:[%s170 + $0x40] sm:$0xf] %vm1825, %v1777
      %1843 = vst.msk [vmem:[%s170 + $0x44] sm:$0xf] %vm1825, %v1778
      %1844 = vst.msk [vmem:[%s170 + $0x48] sm:$0xf] %vm1825, %v1779
      %1845 = vst.msk [vmem:[%s170 + $0x4c] sm:$0xf] %vm1825, %v1780
      %1846 = vst.msk [vmem:[%s170 + $0x50] sm:$0xf] %vm1825, %v1781
      %1847 = vst.msk [vmem:[%s170 + $0x54] sm:$0xf] %vm1825, %v1782
      %1848 = vst.msk [vmem:[%s170 + $0x58] sm:$0xf] %vm1825, %v1783
      %1849 = vst.msk [vmem:[%s170 + $0x5c] sm:$0xf] %vm1825, %v1784
      %1850 = vst.msk [vmem:[%s170 + $0x60] sm:$0xf] %vm1825, %v1785
      %1851 = vst.msk [vmem:[%s170 + $0x64] sm:$0xf] %vm1825, %v1786
      %1852 = vst.msk [vmem:[%s170 + $0x68] sm:$0xf] %vm1825, %v1787
      %1853 = vst.msk [vmem:[%s170 + $0x6c] sm:$0xf] %vm1825, %v1788
      %1854 = vst.msk [vmem:[%s170 + $0x70] sm:$0xf] %vm1825, %v1789
      %1855 = vst.msk [vmem:[%s170 + $0x74] sm:$0xf] %vm1825, %v1790
      %1856 = vst.msk [vmem:[%s170 + $0x78] sm:$0xf] %vm1825, %v1791
      %1857 = vst.msk [vmem:[%s170 + $0x7c] sm:$0xf] %vm1825, %v1792
      %p1858 = scmp.lt.s32.totalorder %s14, 7
      %s1859 = scalar_select %p1858, %s14, 7
      %s1860 = smul.addr %s1859, 32
      %s1861 = smul.addr %s1860, 4
      %s1862 = scalar_lea.vmem %s3, %s1861
      // Predicated region
      $region33: #{tpu_custom_call.1} parent=31 // pred_check
        %p1863 = pneg %p100
      $region34: #{tpu_custom_call.1} parent=31 // pred_check_branch
        %1865 = sbr.rel (%p1863) target = $region36
      $region35: #{tpu_custom_call.1} parent=31 // pred_region
        _
      $region36: #{tpu_custom_call.1} parent=31 // pred_fallthru
        _
    $region32: #{tpu_custom_call.1} parent=5 // pred_fallthru
      _
    %p1866 = scmp.le.s32.totalorder 2, %s9
    // Predicated region
    $region37: #{tpu_custom_call.1} parent=5 // pred_check
      %p1867 = pneg %p1866
    $region38: #{tpu_custom_call.1} parent=5 // pred_check_branch
      %1869 = sbr.rel (%p1867) target = $region40
    $region39: #{tpu_custom_call.1} parent=5 // pred_region
      %s1870 = ssub.s32 %s9, 2
      // Predicated region
      $region41: #{tpu_custom_call.1} parent=39 // pred_check
        %p1871 = pneg %p106
      $region42: #{tpu_custom_call.1} parent=39 // pred_check_branch
        %1873 = sbr.rel (%p1871) target = $region44
      $region43: #{tpu_custom_call.1} parent=39 // pred_region
        %p1874 = scmp.lt.s32.totalorder %s15, 7
        %s1875 = scalar_select %p1874, %s15, 7
        %s1876 = smul.addr %s1875, 32
        %s1877 = smul.addr %s1876, 4
        %s1878 = scalar_lea.vmem %s3, %s1877
      $region44: #{tpu_custom_call.1} parent=39 // pred_fallthru
        _
    $region40: #{tpu_custom_call.1} parent=5 // pred_fallthru
      _
  $region6: #{tpu_custom_call.1} parent=0 // loop_footer
    %s13 = sadd.s32 1, %s9
  $region7: #{tpu_custom_call.1} parent=0 // loop_footer_branch
    %8 = sbr.rel target = $region3
  $region8: #{tpu_custom_call.1} parent=0 // loop_exit
    _

</llo_original>
